<compile_context>
chip_gen: v7x
topology: tpu7x:2x2x1
jax: 0.10.0
libtpu: 0.0.40
codegen_flags: <defaults>
</compile_context>

<pallas_src>
import functools
import math

import numpy as np
import jax
import jax.numpy as jnp
from jax import lax
from jax.experimental import pallas as pl
from jax.experimental.pallas import tpu as pltpu

NEG_SLOPE = 0.2
INV_SQRT2 = 1.0 / math.sqrt(2.0)


def _leaky(x):
    return jnp.where(x >= 0, x, NEG_SLOPE * x)


def disc_block_kernel(xf_ref, mask_ref, pool_ref, w1_ref, w2_ref, ws_ref,
                      out_ref, col1_ref, col2_ref, *, H, W, B):
    HW = H * W
    L = B * HW
    Lo = L // 4
    x = xf_ref[0]                                            # (cin_p, L) f32

    def fill_im2col(a, col_ref):
        """Pack [9 taps (tap-major, channel-minor); 8 bias rows] into the bf16
        scratch, flushing in >=16-row groups ((16,128) bf16 tile aligned)."""
        nch = a.shape[0]
        pieces = []
        for kh in range(3):
            for kw in range(3):
                t = kh * 3 + kw
                s = (kh - 1) * W + (kw - 1)
                shifted = a if s == 0 else pltpu.roll(a, (-s) % L, axis=1)
                # Edge mask zeroes taps outside the image (and across image
                # boundaries of the batch fold).  Center tap needs no mask.
                pieces.append(shifted if t == 4 else shifted * mask_ref[t, 0:nch, :])
        pieces.append(mask_ref[9, 0:8, :])                   # bias rows: row0=1, 1..7=0
        row, group, grows = 0, [], 0
        for i, p in enumerate(pieces):
            group.append(p)
            grows += p.shape[0]
            if grows % 16 == 0 or i == len(pieces) - 1:
                blk = group[0] if len(group) == 1 else jnp.concatenate(group, axis=0)
                col_ref[pl.ds(row, grows), :] = blk.astype(jnp.bfloat16)
                row, group, grows = row + grows, [], 0

    # conv3x3 + bias -> leaky, twice (one packed bf16 MXU matmul each).
    fill_im2col(x, col1_ref)
    y1 = _leaky(jnp.dot(w1_ref[...], col1_ref[...],
                        preferred_element_type=jnp.float32))
    fill_im2col(y1, col2_ref)
    y2 = _leaky(jnp.dot(w2_ref[...], col2_ref[...],
                        preferred_element_type=jnp.float32))

    # Fused 2x2-average downsample + decimation: block-diagonal 0.25-selection
    # matrix (each column sums to 1); one bf16 MXU matmul per operand.
    pool = pool_ref[...]                                     # (L, Lo) bf16
    conv_out = jnp.dot(y2.astype(jnp.bfloat16), pool,
                       preferred_element_type=jnp.float32)   # (Cout, Lo)
    xd = jnp.dot(x.astype(jnp.bfloat16), pool,
                 preferred_element_type=jnp.float32)         # (cin_p, Lo)

    # skip: downsample -> 1x1 conv (bias folded) -> leaky
    skip_in = jnp.concatenate([xd, mask_ref[9, 0:8, 0:Lo]],
                              axis=0).astype(jnp.bfloat16)   # (cin_p+8, Lo)
    skip = _leaky(jnp.dot(ws_ref[...], skip_in, preferred_element_type=jnp.float32))

    out_ref[0] = ((conv_out + skip) * INV_SQRT2).astype(out_ref.dtype)


def make_constant_masks(H, W, B, nch):
    """(10, nch, B*H*W) f32.  Rows 0..8: per-tap validity masks, broadcast over
    channels and tiled per folded image.  Row 9: bias pattern (sublane 0 = 1)."""
    HW = H * W
    L = B * HW
    base = np.zeros((9, HW), np.float32)
    for kh in range(3):
        for kw in range(3):
            t = kh * 3 + kw
            dh, dw = kh - 1, kw - 1
            for h in range(H):
                if 0 <= h + dh < H:
                    lo, hi = max(0, -dw), min(W, W - dw)
                    base[t, h * W + lo:h * W + hi] = 1.0
    masks = np.zeros((10, nch, L), np.float32)
    masks[:9] = np.tile(base, (1, B))[:, None, :]
    masks[9, 0, :] = 1.0
    return jnp.asarray(masks)


def make_pool_matrix(H, W, B):
    """(B*HW, B*HW/4) bf16 selection matrix: exact 2x2 average + decimation,
    block-diagonal across the B folded images."""
    HW, Ho, Wo = H * W, H // 2, W // 2
    HWo = Ho * Wo
    P = np.zeros((B * HW, B * HWo), np.float32)
    for b in range(B):
        for h in range(H):
            for w in range(W):
                P[b * HW + h * W + w, b * HWo + (h // 2) * Wo + (w // 2)] = 0.25
    return jnp.asarray(P).astype(jnp.bfloat16)


def _pack_conv_weight(w, b, cin_pad):
    """torch (Cout, Cin, 3, 3) weight + bias -> (Cout, 9*cin_pad + 8) bf16,
    column order matching the im2col rows (tap-major, channel-minor, bias)."""
    cout, cin = w.shape[0], w.shape[1]
    wt = jnp.transpose(w, (0, 2, 3, 1))                      # (Cout, kh, kw, Cin)
    if cin_pad != cin:
        wt = jnp.pad(wt, ((0, 0), (0, 0), (0, 0), (0, cin_pad - cin)))
    wp = wt.reshape(cout, 9 * cin_pad)
    bias_cols = jnp.concatenate(
        [b.reshape(cout, 1), jnp.zeros((cout, 7), jnp.float32)], axis=1)
    return jnp.concatenate([wp, bias_cols], axis=1).astype(jnp.bfloat16)


def _pick_batch_fold(N, HW):
    """How many images to fold into the lane dim per grid step."""
    HWo = HW // 4
    def score(b):
        # (1) keep >=2 grid steps when possible (dual TensorCore on v7x),
        # (2) lane-dense pooled output (B*HW/4 >= 128 -> unmasked stores),
        # (3) then the largest fold (amortize per-grid-step overhead).
        return (N // b >= 2, b * HWo >= 128, b)
    return max((b for b in range(1, N + 1) if N % b == 0), key=score)


def discriminator_block(x_nchw, params, batch_fold=None):
    N, Cin, H, W = x_nchw.shape
    Cout = params["w1"].shape[0]
    HW = H * W
    Ho, Wo = H // 2, W // 2
    HWo = Ho * Wo
    assert H % 2 == 0 and W % 2 == 0
    assert Cout % 8 == 0, "kernel keeps Cout on sublanes in multiples of 8"
    cin_p = -(-Cin // 8) * 8                                 # pad channels to sublane tile
    cmax = max(cin_p, Cout)

    B = batch_fold if batch_fold is not None else _pick_batch_fold(N, HW)
    assert N % B == 0
    G = N // B
    L, Lo = B * HW, B * HWo
    assert L % 128 == 0, "folded lane width must be a multiple of 128"

    # Layout glue (tiny, outside the kernel): NCHW -> (G, C, B*HW): per grid
    # step, B images side-by-side along lanes, channels on sublanes.
    xf = x_nchw.astype(jnp.float32).reshape(G, B, Cin, HW)
    xf = jnp.transpose(xf, (0, 2, 1, 3)).reshape(G, Cin, L)
    if cin_p != Cin:
        xf = jnp.pad(xf, ((0, 0), (0, cin_p - Cin), (0, 0)))

    masks = make_constant_masks(H, W, B, cmax)               # (10, cmax, L) f32
    pool = make_pool_matrix(H, W, B)                         # (L, Lo) bf16
    w1a = _pack_conv_weight(params["w1"], params["b1"], cin_p)   # (Cout, 9*cin_p+8)
    w2a = _pack_conv_weight(params["w2"], params["b2"], Cout)    # (Cout, 9*Cout+8)
    ws = jnp.pad(params["ws"][:, :, 0, 0], ((0, 0), (0, cin_p - Cin)))
    wsa = jnp.concatenate(
        [ws, params["bs"].reshape(Cout, 1), jnp.zeros((Cout, 7), jnp.float32)],
        axis=1).astype(jnp.bfloat16)                         # (Cout, cin_p+8)

    def _nbytes(shape, dtype):
        return int(np.prod(shape)) * np.dtype(dtype).itemsize

    block_bytes = (_nbytes((1, cin_p, L), np.float32)
                   + _nbytes((10, cmax, L), np.float32)
                   + _nbytes((L, Lo), jnp.bfloat16)
                   + _nbytes(w1a.shape, jnp.bfloat16)
                   + _nbytes(w2a.shape, jnp.bfloat16)
                   + _nbytes(wsa.shape, jnp.bfloat16)
                   + _nbytes((1, Cout, Lo), np.float32))
    scratch_bytes = (_nbytes((9 * cin_p + 8, L), jnp.bfloat16)
                     + _nbytes((9 * Cout + 8, L), jnp.bfloat16))
    # Double-buffered blocks + scratch + headroom; cap below v7x's 64 MiB VMEM.
    vmem_limit = int(min(max(2 * block_bytes + scratch_bytes + (8 << 20), 16 << 20),
                         48 << 20))

    out = pl.pallas_call(
        functools.partial(disc_block_kernel, H=H, W=W, B=B),
        out_shape=jax.ShapeDtypeStruct((G, Cout, Lo), jnp.float32),
        grid_spec=pltpu.PrefetchScalarGridSpec(
            num_scalar_prefetch=0,
            grid=(G,),
            in_specs=[
                pl.BlockSpec((1, cin_p, L), lambda n: (n, 0, 0)),         # x
                pl.BlockSpec((10, cmax, L), lambda n: (0, 0, 0)),         # edge masks + bias row
                pl.BlockSpec((L, Lo), lambda n: (0, 0)),                  # pool selection matrix
                pl.BlockSpec((Cout, 9 * cin_p + 8), lambda n: (0, 0)),    # conv1 w+b
                pl.BlockSpec((Cout, 9 * Cout + 8), lambda n: (0, 0)),     # conv2 w+b
                pl.BlockSpec((Cout, cin_p + 8), lambda n: (0, 0)),        # skip 1x1 w+b
            ],
            out_specs=pl.BlockSpec((1, Cout, Lo), lambda n: (n, 0, 0)),
            scratch_shapes=[
                pltpu.VMEM((9 * cin_p + 8, L), jnp.bfloat16),             # im2col for conv1
                pltpu.VMEM((9 * Cout + 8, L), jnp.bfloat16),              # im2col for conv2
            ]),
        compiler_params=pltpu.CompilerParams(
            dimension_semantics=("parallel",),     # independent grid steps -> both TCs on v7x
            vmem_limit_bytes=vmem_limit),
    )(xf, masks, pool, w1a, w2a, wsa)

    # Layout glue back: (G, Cout, B*HWo) -> (N, Cout, Ho, Wo).
    out = out.reshape(G, Cout, B, Ho, Wo)
    return jnp.transpose(out, (0, 2, 1, 3, 4)).reshape(N, Cout, Ho, Wo)


def init_params(key, cin, cout):
    """Deterministic synthetic init matching nn.Conv2d parameter shapes."""
    ks = jax.random.split(key, 6)

    def u(k, shape, fan_in):
        bound = 1.0 / math.sqrt(fan_in)
        return jax.random.uniform(k, shape, jnp.float32, -bound, bound)

    return {
        "w1": u(ks[0], (cout, cin, 3, 3), cin * 9),
        "b1": u(ks[1], (cout,), cin * 9),
        "w2": u(ks[2], (cout, cout, 3, 3), cout * 9),
        "b2": u(ks[3], (cout,), cout * 9),
        "ws": u(ks[4], (cout, cin, 1, 1), cin),
        "bs": u(ks[5], (cout,), cin),
    }


def reference(x, params):
    """Pure-JAX reference of the PyTorch forward (high-precision sanity check)."""
    dn = ("NCHW", "OIHW", "NCHW")
    hp = lax.Precision.HIGHEST
    y = lax.conv_general_dilated(x, params["w1"], (1, 1), ((1, 1), (1, 1)),
                                 dimension_numbers=dn, precision=hp)
    y = _leaky(y + params["b1"][None, :, None, None])
    y = lax.conv_general_dilated(y, params["w2"], (1, 1), ((1, 1), (1, 1)),
                                 dimension_numbers=dn, precision=hp)
    y = _leaky(y + params["b2"][None, :, None, None])
    N, C, H, W = y.shape
    y = y.reshape(N, C, H // 2, 2, W // 2, 2).mean(axis=(3, 5))
    xd = x.reshape(x.shape[0], x.shape[1], H // 2, 2, W // 2, 2).mean(axis=(3, 5))
    s = lax.conv_general_dilated(xd, params["ws"], (1, 1), ((0, 0), (0, 0)),
                                 dimension_numbers=dn, precision=hp)
    s = _leaky(s + params["bs"][None, :, None, None])
    return (y + s) * INV_SQRT2


if __name__ == "__main__":
    key = jax.random.PRNGKey(0)
    kx, kp = jax.random.split(key)
    # N=4 exercises the batch fold (B=2 images per grid step) while keeping
    # 2 grid steps for v7x's dual TensorCore; pooled lane width = 128.
    N, Cin, Cout, H, W = 4, 4, 8, 16, 16

    x = jax.random.normal(kx, (N, Cin, H, W), jnp.float32)
    params = init_params(kp, Cin, Cout)

    out = jax.block_until_ready(discriminator_block(x, params))

    assert out.shape == (N, Cout, H // 2, W // 2), out.shape
    assert bool(jnp.all(jnp.isfinite(out)))

    # loose tolerance: bf16 MXU operands vs f32 HIGHEST-precision reference
    ref = reference(x, params)
    err = float(jnp.max(jnp.abs(out - ref)))
    assert err < 5e-2, err

    print("KERNEL_OK")
</pallas_src>

<mosaic_0001>
module attributes {stable_mosaic.version = 11 : i64} {
  func.func @disc_block_kernel(%arg0: i32, %arg1: memref<1x8x512xf32, #tpu.memory_space<vmem>>, %arg2: memref<10x8x512xf32, #tpu.memory_space<vmem>>, %arg3: memref<512x128xbf16, #tpu.memory_space<vmem>>, %arg4: memref<8x80xbf16, #tpu.memory_space<vmem>>, %arg5: memref<8x80xbf16, #tpu.memory_space<vmem>>, %arg6: memref<8x16xbf16, #tpu.memory_space<vmem>>, %arg7: memref<1x8x128xf32, #tpu.memory_space<vmem>>, %arg8: memref<80x512xbf16, #tpu.memory_space<vmem>>, %arg9: memref<80x512xbf16, #tpu.memory_space<vmem>>) attributes {dimension_semantics = [#tpu.dimension_semantics<parallel>], iteration_bounds = array<i64: 2>, scalar_prefetch = 0 : i64, scratch_operands = 2 : i64, tpu.core_type = #tpu.core_type<tc>, window_params = [{transform_indices = @transform_0, window_bounds = array<i64: 1, 8, 512>}, {pipeline_mode = #tpu.pipeline_mode<synchronous>, transform_indices = @transform_1, window_bounds = array<i64: 10, 8, 512>}, {pipeline_mode = #tpu.pipeline_mode<synchronous>, transform_indices = @transform_2, window_bounds = array<i64: 512, 128>}, {pipeline_mode = #tpu.pipeline_mode<synchronous>, transform_indices = @transform_3, window_bounds = array<i64: 8, 80>}, {pipeline_mode = #tpu.pipeline_mode<synchronous>, transform_indices = @transform_4, window_bounds = array<i64: 8, 80>}, {pipeline_mode = #tpu.pipeline_mode<synchronous>, transform_indices = @transform_5, window_bounds = array<i64: 8, 16>}, {transform_indices = @transform_6, window_bounds = array<i64: 1, 8, 128>}]} {
    %c0 = arith.constant 0 : index
    %c0_0 = arith.constant 0 : index
    %c0_1 = arith.constant 0 : index
    %0 = vector.load %arg1[%c0, %c0_0, %c0_1] : memref<1x8x512xf32, #tpu.memory_space<vmem>>, vector<1x8x512xf32>
    %1 = vector.shape_cast %0 : vector<1x8x512xf32> to vector<8x512xf32>
    %c17_i32 = arith.constant 17 : i32
    %2 = tpu.dynamic_rotate %1 by %c17_i32 dim 1 : vector<8x512xf32>, i32 -> vector<8x512xf32>
    %c0_2 = arith.constant 0 : index
    %c0_3 = arith.constant 0 : index
    %c0_4 = arith.constant 0 : index
    %3 = vector.load %arg2[%c0_2, %c0_3, %c0_4] : memref<10x8x512xf32, #tpu.memory_space<vmem>>, vector<1x8x512xf32>
    %4 = vector.shape_cast %3 : vector<1x8x512xf32> to vector<8x512xf32>
    %5 = arith.mulf %2, %4 : vector<8x512xf32>
    %c16_i32 = arith.constant 16 : i32
    %6 = tpu.dynamic_rotate %1 by %c16_i32 dim 1 : vector<8x512xf32>, i32 -> vector<8x512xf32>
    %c1 = arith.constant 1 : index
    %c0_5 = arith.constant 0 : index
    %c0_6 = arith.constant 0 : index
    %7 = vector.load %arg2[%c1, %c0_5, %c0_6] : memref<10x8x512xf32, #tpu.memory_space<vmem>>, vector<1x8x512xf32>
    %8 = vector.shape_cast %7 : vector<1x8x512xf32> to vector<8x512xf32>
    %9 = arith.mulf %6, %8 : vector<8x512xf32>
    %c15_i32 = arith.constant 15 : i32
    %10 = tpu.dynamic_rotate %1 by %c15_i32 dim 1 : vector<8x512xf32>, i32 -> vector<8x512xf32>
    %c2 = arith.constant 2 : index
    %c0_7 = arith.constant 0 : index
    %c0_8 = arith.constant 0 : index
    %11 = vector.load %arg2[%c2, %c0_7, %c0_8] : memref<10x8x512xf32, #tpu.memory_space<vmem>>, vector<1x8x512xf32>
    %12 = vector.shape_cast %11 : vector<1x8x512xf32> to vector<8x512xf32>
    %13 = arith.mulf %10, %12 : vector<8x512xf32>
    %c1_i32 = arith.constant 1 : i32
    %14 = tpu.dynamic_rotate %1 by %c1_i32 dim 1 : vector<8x512xf32>, i32 -> vector<8x512xf32>
    %c3 = arith.constant 3 : index
    %c0_9 = arith.constant 0 : index
    %c0_10 = arith.constant 0 : index
    %15 = vector.load %arg2[%c3, %c0_9, %c0_10] : memref<10x8x512xf32, #tpu.memory_space<vmem>>, vector<1x8x512xf32>
    %16 = vector.shape_cast %15 : vector<1x8x512xf32> to vector<8x512xf32>
    %17 = arith.mulf %14, %16 : vector<8x512xf32>
    %c511_i32 = arith.constant 511 : i32
    %18 = tpu.dynamic_rotate %1 by %c511_i32 dim 1 : vector<8x512xf32>, i32 -> vector<8x512xf32>
    %c5 = arith.constant 5 : index
    %c0_11 = arith.constant 0 : index
    %c0_12 = arith.constant 0 : index
    %19 = vector.load %arg2[%c5, %c0_11, %c0_12] : memref<10x8x512xf32, #tpu.memory_space<vmem>>, vector<1x8x512xf32>
    %20 = vector.shape_cast %19 : vector<1x8x512xf32> to vector<8x512xf32>
    %21 = arith.mulf %18, %20 : vector<8x512xf32>
    %c497_i32 = arith.constant 497 : i32
    %22 = tpu.dynamic_rotate %1 by %c497_i32 dim 1 : vector<8x512xf32>, i32 -> vector<8x512xf32>
    %c6 = arith.constant 6 : index
    %c0_13 = arith.constant 0 : index
    %c0_14 = arith.constant 0 : index
    %23 = vector.load %arg2[%c6, %c0_13, %c0_14] : memref<10x8x512xf32, #tpu.memory_space<vmem>>, vector<1x8x512xf32>
    %24 = vector.shape_cast %23 : vector<1x8x512xf32> to vector<8x512xf32>
    %25 = arith.mulf %22, %24 : vector<8x512xf32>
    %c496_i32 = arith.constant 496 : i32
    %26 = tpu.dynamic_rotate %1 by %c496_i32 dim 1 : vector<8x512xf32>, i32 -> vector<8x512xf32>
    %c7 = arith.constant 7 : index
    %c0_15 = arith.constant 0 : index
    %c0_16 = arith.constant 0 : index
    %27 = vector.load %arg2[%c7, %c0_15, %c0_16] : memref<10x8x512xf32, #tpu.memory_space<vmem>>, vector<1x8x512xf32>
    %28 = vector.shape_cast %27 : vector<1x8x512xf32> to vector<8x512xf32>
    %29 = arith.mulf %26, %28 : vector<8x512xf32>
    %c495_i32 = arith.constant 495 : i32
    %30 = tpu.dynamic_rotate %1 by %c495_i32 dim 1 : vector<8x512xf32>, i32 -> vector<8x512xf32>
    %c8 = arith.constant 8 : index
    %c0_17 = arith.constant 0 : index
    %c0_18 = arith.constant 0 : index
    %31 = vector.load %arg2[%c8, %c0_17, %c0_18] : memref<10x8x512xf32, #tpu.memory_space<vmem>>, vector<1x8x512xf32>
    %32 = vector.shape_cast %31 : vector<1x8x512xf32> to vector<8x512xf32>
    %33 = arith.mulf %30, %32 : vector<8x512xf32>
    %c9 = arith.constant 9 : index
    %c0_19 = arith.constant 0 : index
    %c0_20 = arith.constant 0 : index
    %34 = vector.load %arg2[%c9, %c0_19, %c0_20] : memref<10x8x512xf32, #tpu.memory_space<vmem>>, vector<1x8x512xf32>
    %35 = vector.shape_cast %34 : vector<1x8x512xf32> to vector<8x512xf32>
    %36 = tpu.concatenate %5, %9 in 0 : vector<8x512xf32>, vector<8x512xf32> -> vector<16x512xf32>
    %37 = arith.truncf %36 : vector<16x512xf32> to vector<16x512xbf16>
    %c0_21 = arith.constant 0 : index
    %c0_22 = arith.constant 0 : index
    %38 = vector.load %arg8[%c0_21, %c0_22] : memref<80x512xbf16, #tpu.memory_space<vmem>>, vector<16x512xbf16>
    tpu.vector_store %arg8[%c0_21, %c0_22], %37 {strides = array<i32>} : memref<80x512xbf16, #tpu.memory_space<vmem>>, vector<16x512xbf16>,
    %39 = tpu.concatenate %13, %17 in 0 : vector<8x512xf32>, vector<8x512xf32> -> vector<16x512xf32>
    %40 = arith.truncf %39 : vector<16x512xf32> to vector<16x512xbf16>
    %c16 = arith.constant 16 : index
    %c0_23 = arith.constant 0 : index
    %41 = vector.load %arg8[%c16, %c0_23] : memref<80x512xbf16, #tpu.memory_space<vmem>>, vector<16x512xbf16>
    tpu.vector_store %arg8[%c16, %c0_23], %40 {strides = array<i32>} : memref<80x512xbf16, #tpu.memory_space<vmem>>, vector<16x512xbf16>,
    %42 = tpu.concatenate %1, %21 in 0 : vector<8x512xf32>, vector<8x512xf32> -> vector<16x512xf32>
    %43 = arith.truncf %42 : vector<16x512xf32> to vector<16x512xbf16>
    %c32 = arith.constant 32 : index
    %c0_24 = arith.constant 0 : index
    %44 = vector.load %arg8[%c32, %c0_24] : memref<80x512xbf16, #tpu.memory_space<vmem>>, vector<16x512xbf16>
    tpu.vector_store %arg8[%c32, %c0_24], %43 {strides = array<i32>} : memref<80x512xbf16, #tpu.memory_space<vmem>>, vector<16x512xbf16>,
    %45 = tpu.concatenate %25, %29 in 0 : vector<8x512xf32>, vector<8x512xf32> -> vector<16x512xf32>
    %46 = arith.truncf %45 : vector<16x512xf32> to vector<16x512xbf16>
    %c48 = arith.constant 48 : index
    %c0_25 = arith.constant 0 : index
    %47 = vector.load %arg8[%c48, %c0_25] : memref<80x512xbf16, #tpu.memory_space<vmem>>, vector<16x512xbf16>
    tpu.vector_store %arg8[%c48, %c0_25], %46 {strides = array<i32>} : memref<80x512xbf16, #tpu.memory_space<vmem>>, vector<16x512xbf16>,
    %48 = tpu.concatenate %33, %35 in 0 : vector<8x512xf32>, vector<8x512xf32> -> vector<16x512xf32>
    %49 = arith.truncf %48 : vector<16x512xf32> to vector<16x512xbf16>
    %c64 = arith.constant 64 : index
    %c0_26 = arith.constant 0 : index
    %50 = vector.load %arg8[%c64, %c0_26] : memref<80x512xbf16, #tpu.memory_space<vmem>>, vector<16x512xbf16>
    tpu.vector_store %arg8[%c64, %c0_26], %49 {strides = array<i32>} : memref<80x512xbf16, #tpu.memory_space<vmem>>, vector<16x512xbf16>,
    %c0_27 = arith.constant 0 : index
    %c0_28 = arith.constant 0 : index
    %51 = vector.load %arg4[%c0_27, %c0_28] : memref<8x80xbf16, #tpu.memory_space<vmem>>, vector<8x80xbf16>
    %c0_29 = arith.constant 0 : index
    %c0_30 = arith.constant 0 : index
    %52 = vector.load %arg8[%c0_29, %c0_30] : memref<80x512xbf16, #tpu.memory_space<vmem>>, vector<80x512xbf16>
    %cst = arith.constant dense<0.000000e+00> : vector<8x512xf32>
    %53 = tpu.matmul %51, %52, %cst {dimension_numbers = #tpu.dot_dimension_numbers<[1], [0], [0], [1], [0, 0, 1, 1], [], []>} : vector<8x80xbf16>, vector<80x512xbf16>, vector<8x512xf32> -> vector<8x512xf32>
    %cst_31 = arith.constant 0.000000e+00 : f32
    %54 = vector.broadcast %cst_31 : f32 to vector<8x512xf32>
    %55 = arith.cmpf oge, %53, %54 : vector<8x512xf32>
    %cst_32 = arith.constant 2.000000e-01 : f32
    %56 = vector.broadcast %cst_32 : f32 to vector<8x512xf32>
    %57 = arith.mulf %56, %53 : vector<8x512xf32>
    %58 = arith.select %55, %53, %57 : vector<8x512xi1>, vector<8x512xf32>
    %c17_i32_33 = arith.constant 17 : i32
    %59 = tpu.dynamic_rotate %58 by %c17_i32_33 dim 1 : vector<8x512xf32>, i32 -> vector<8x512xf32>
    %c0_34 = arith.constant 0 : index
    %c0_35 = arith.constant 0 : index
    %c0_36 = arith.constant 0 : index
    %60 = vector.load %arg2[%c0_34, %c0_35, %c0_36] : memref<10x8x512xf32, #tpu.memory_space<vmem>>, vector<1x8x512xf32>
    %61 = vector.shape_cast %60 : vector<1x8x512xf32> to vector<8x512xf32>
    %62 = arith.mulf %59, %61 : vector<8x512xf32>
    %c16_i32_37 = arith.constant 16 : i32
    %63 = tpu.dynamic_rotate %58 by %c16_i32_37 dim 1 : vector<8x512xf32>, i32 -> vector<8x512xf32>
    %c1_38 = arith.constant 1 : index
    %c0_39 = arith.constant 0 : index
    %c0_40 = arith.constant 0 : index
    %64 = vector.load %arg2[%c1_38, %c0_39, %c0_40] : memref<10x8x512xf32, #tpu.memory_space<vmem>>, vector<1x8x512xf32>
    %65 = vector.shape_cast %64 : vector<1x8x512xf32> to vector<8x512xf32>
    %66 = arith.mulf %63, %65 : vector<8x512xf32>
    %c15_i32_41 = arith.constant 15 : i32
    %67 = tpu.dynamic_rotate %58 by %c15_i32_41 dim 1 : vector<8x512xf32>, i32 -> vector<8x512xf32>
    %c2_42 = arith.constant 2 : index
    %c0_43 = arith.constant 0 : index
    %c0_44 = arith.constant 0 : index
    %68 = vector.load %arg2[%c2_42, %c0_43, %c0_44] : memref<10x8x512xf32, #tpu.memory_space<vmem>>, vector<1x8x512xf32>
    %69 = vector.shape_cast %68 : vector<1x8x512xf32> to vector<8x512xf32>
    %70 = arith.mulf %67, %69 : vector<8x512xf32>
    %c1_i32_45 = arith.constant 1 : i32
    %71 = tpu.dynamic_rotate %58 by %c1_i32_45 dim 1 : vector<8x512xf32>, i32 -> vector<8x512xf32>
    %c3_46 = arith.constant 3 : index
    %c0_47 = arith.constant 0 : index
    %c0_48 = arith.constant 0 : index
    %72 = vector.load %arg2[%c3_46, %c0_47, %c0_48] : memref<10x8x512xf32, #tpu.memory_space<vmem>>, vector<1x8x512xf32>
    %73 = vector.shape_cast %72 : vector<1x8x512xf32> to vector<8x512xf32>
    %74 = arith.mulf %71, %73 : vector<8x512xf32>
    %c511_i32_49 = arith.constant 511 : i32
    %75 = tpu.dynamic_rotate %58 by %c511_i32_49 dim 1 : vector<8x512xf32>, i32 -> vector<8x512xf32>
    %c5_50 = arith.constant 5 : index
    %c0_51 = arith.constant 0 : index
    %c0_52 = arith.constant 0 : index
    %76 = vector.load %arg2[%c5_50, %c0_51, %c0_52] : memref<10x8x512xf32, #tpu.memory_space<vmem>>, vector<1x8x512xf32>
    %77 = vector.shape_cast %76 : vector<1x8x512xf32> to vector<8x512xf32>
    %78 = arith.mulf %75, %77 : vector<8x512xf32>
    %c497_i32_53 = arith.constant 497 : i32
    %79 = tpu.dynamic_rotate %58 by %c497_i32_53 dim 1 : vector<8x512xf32>, i32 -> vector<8x512xf32>
    %c6_54 = arith.constant 6 : index
    %c0_55 = arith.constant 0 : index
    %c0_56 = arith.constant 0 : index
    %80 = vector.load %arg2[%c6_54, %c0_55, %c0_56] : memref<10x8x512xf32, #tpu.memory_space<vmem>>, vector<1x8x512xf32>
    %81 = vector.shape_cast %80 : vector<1x8x512xf32> to vector<8x512xf32>
    %82 = arith.mulf %79, %81 : vector<8x512xf32>
    %c496_i32_57 = arith.constant 496 : i32
    %83 = tpu.dynamic_rotate %58 by %c496_i32_57 dim 1 : vector<8x512xf32>, i32 -> vector<8x512xf32>
    %c7_58 = arith.constant 7 : index
    %c0_59 = arith.constant 0 : index
    %c0_60 = arith.constant 0 : index
    %84 = vector.load %arg2[%c7_58, %c0_59, %c0_60] : memref<10x8x512xf32, #tpu.memory_space<vmem>>, vector<1x8x512xf32>
    %85 = vector.shape_cast %84 : vector<1x8x512xf32> to vector<8x512xf32>
    %86 = arith.mulf %83, %85 : vector<8x512xf32>
    %c495_i32_61 = arith.constant 495 : i32
    %87 = tpu.dynamic_rotate %58 by %c495_i32_61 dim 1 : vector<8x512xf32>, i32 -> vector<8x512xf32>
    %c8_62 = arith.constant 8 : index
    %c0_63 = arith.constant 0 : index
    %c0_64 = arith.constant 0 : index
    %88 = vector.load %arg2[%c8_62, %c0_63, %c0_64] : memref<10x8x512xf32, #tpu.memory_space<vmem>>, vector<1x8x512xf32>
    %89 = vector.shape_cast %88 : vector<1x8x512xf32> to vector<8x512xf32>
    %90 = arith.mulf %87, %89 : vector<8x512xf32>
    %c9_65 = arith.constant 9 : index
    %c0_66 = arith.constant 0 : index
    %c0_67 = arith.constant 0 : index
    %91 = vector.load %arg2[%c9_65, %c0_66, %c0_67] : memref<10x8x512xf32, #tpu.memory_space<vmem>>, vector<1x8x512xf32>
    %92 = vector.shape_cast %91 : vector<1x8x512xf32> to vector<8x512xf32>
    %93 = tpu.concatenate %62, %66 in 0 : vector<8x512xf32>, vector<8x512xf32> -> vector<16x512xf32>
    %94 = arith.truncf %93 : vector<16x512xf32> to vector<16x512xbf16>
    %c0_68 = arith.constant 0 : index
    %c0_69 = arith.constant 0 : index
    %95 = vector.load %arg9[%c0_68, %c0_69] : memref<80x512xbf16, #tpu.memory_space<vmem>>, vector<16x512xbf16>
    tpu.vector_store %arg9[%c0_68, %c0_69], %94 {strides = array<i32>} : memref<80x512xbf16, #tpu.memory_space<vmem>>, vector<16x512xbf16>,
    %96 = tpu.concatenate %70, %74 in 0 : vector<8x512xf32>, vector<8x512xf32> -> vector<16x512xf32>
    %97 = arith.truncf %96 : vector<16x512xf32> to vector<16x512xbf16>
    %c16_70 = arith.constant 16 : index
    %c0_71 = arith.constant 0 : index
    %98 = vector.load %arg9[%c16_70, %c0_71] : memref<80x512xbf16, #tpu.memory_space<vmem>>, vector<16x512xbf16>
    tpu.vector_store %arg9[%c16_70, %c0_71], %97 {strides = array<i32>} : memref<80x512xbf16, #tpu.memory_space<vmem>>, vector<16x512xbf16>,
    %99 = tpu.concatenate %58, %78 in 0 : vector<8x512xf32>, vector<8x512xf32> -> vector<16x512xf32>
    %100 = arith.truncf %99 : vector<16x512xf32> to vector<16x512xbf16>
    %c32_72 = arith.constant 32 : index
    %c0_73 = arith.constant 0 : index
    %101 = vector.load %arg9[%c32_72, %c0_73] : memref<80x512xbf16, #tpu.memory_space<vmem>>, vector<16x512xbf16>
    tpu.vector_store %arg9[%c32_72, %c0_73], %100 {strides = array<i32>} : memref<80x512xbf16, #tpu.memory_space<vmem>>, vector<16x512xbf16>,
    %102 = tpu.concatenate %82, %86 in 0 : vector<8x512xf32>, vector<8x512xf32> -> vector<16x512xf32>
    %103 = arith.truncf %102 : vector<16x512xf32> to vector<16x512xbf16>
    %c48_74 = arith.constant 48 : index
    %c0_75 = arith.constant 0 : index
    %104 = vector.load %arg9[%c48_74, %c0_75] : memref<80x512xbf16, #tpu.memory_space<vmem>>, vector<16x512xbf16>
    tpu.vector_store %arg9[%c48_74, %c0_75], %103 {strides = array<i32>} : memref<80x512xbf16, #tpu.memory_space<vmem>>, vector<16x512xbf16>,
    %105 = tpu.concatenate %90, %92 in 0 : vector<8x512xf32>, vector<8x512xf32> -> vector<16x512xf32>
    %106 = arith.truncf %105 : vector<16x512xf32> to vector<16x512xbf16>
    %c64_76 = arith.constant 64 : index
    %c0_77 = arith.constant 0 : index
    %107 = vector.load %arg9[%c64_76, %c0_77] : memref<80x512xbf16, #tpu.memory_space<vmem>>, vector<16x512xbf16>
    tpu.vector_store %arg9[%c64_76, %c0_77], %106 {strides = array<i32>} : memref<80x512xbf16, #tpu.memory_space<vmem>>, vector<16x512xbf16>,
    %c0_78 = arith.constant 0 : index
    %c0_79 = arith.constant 0 : index
    %108 = vector.load %arg5[%c0_78, %c0_79] : memref<8x80xbf16, #tpu.memory_space<vmem>>, vector<8x80xbf16>
    %c0_80 = arith.constant 0 : index
    %c0_81 = arith.constant 0 : index
    %109 = vector.load %arg9[%c0_80, %c0_81] : memref<80x512xbf16, #tpu.memory_space<vmem>>, vector<80x512xbf16>
    %cst_82 = arith.constant dense<0.000000e+00> : vector<8x512xf32>
    %110 = tpu.matmul %108, %109, %cst_82 {dimension_numbers = #tpu.dot_dimension_numbers<[1], [0], [0], [1], [0, 0, 1, 1], [], []>} : vector<8x80xbf16>, vector<80x512xbf16>, vector<8x512xf32> -> vector<8x512xf32>
    %cst_83 = arith.constant 0.000000e+00 : f32
    %111 = vector.broadcast %cst_83 : f32 to vector<8x512xf32>
    %112 = arith.cmpf oge, %110, %111 : vector<8x512xf32>
    %cst_84 = arith.constant 2.000000e-01 : f32
    %113 = vector.broadcast %cst_84 : f32 to vector<8x512xf32>
    %114 = arith.mulf %113, %110 : vector<8x512xf32>
    %115 = arith.select %112, %110, %114 : vector<8x512xi1>, vector<8x512xf32>
    %c0_85 = arith.constant 0 : index
    %c0_86 = arith.constant 0 : index
    %116 = vector.load %arg3[%c0_85, %c0_86] : memref<512x128xbf16, #tpu.memory_space<vmem>>, vector<512x128xbf16>
    %117 = arith.truncf %115 : vector<8x512xf32> to vector<8x512xbf16>
    %cst_87 = arith.constant dense<0.000000e+00> : vector<8x128xf32>
    %118 = tpu.matmul %117, %116, %cst_87 {dimension_numbers = #tpu.dot_dimension_numbers<[1], [0], [0], [1], [0, 0, 1, 1], [], []>} : vector<8x512xbf16>, vector<512x128xbf16>, vector<8x128xf32> -> vector<8x128xf32>
    %119 = arith.truncf %1 : vector<8x512xf32> to vector<8x512xbf16>
    %cst_88 = arith.constant dense<0.000000e+00> : vector<8x128xf32>
    %120 = tpu.matmul %119, %116, %cst_88 {dimension_numbers = #tpu.dot_dimension_numbers<[1], [0], [0], [1], [0, 0, 1, 1], [], []>} : vector<8x512xbf16>, vector<512x128xbf16>, vector<8x128xf32> -> vector<8x128xf32>
    %c9_89 = arith.constant 9 : index
    %c0_90 = arith.constant 0 : index
    %c0_91 = arith.constant 0 : index
    %121 = vector.load %arg2[%c9_89, %c0_90, %c0_91] : memref<10x8x512xf32, #tpu.memory_space<vmem>>, vector<1x8x128xf32>
    %122 = vector.shape_cast %121 : vector<1x8x128xf32> to vector<8x128xf32>
    %123 = tpu.concatenate %120, %122 in 0 : vector<8x128xf32>, vector<8x128xf32> -> vector<16x128xf32>
    %124 = arith.truncf %123 : vector<16x128xf32> to vector<16x128xbf16>
    %c0_92 = arith.constant 0 : index
    %c0_93 = arith.constant 0 : index
    %125 = vector.load %arg6[%c0_92, %c0_93] : memref<8x16xbf16, #tpu.memory_space<vmem>>, vector<8x16xbf16>
    %cst_94 = arith.constant dense<0.000000e+00> : vector<8x128xf32>
    %126 = tpu.matmul %125, %124, %cst_94 {dimension_numbers = #tpu.dot_dimension_numbers<[1], [0], [0], [1], [0, 0, 1, 1], [], []>} : vector<8x16xbf16>, vector<16x128xbf16>, vector<8x128xf32> -> vector<8x128xf32>
    %cst_95 = arith.constant 0.000000e+00 : f32
    %127 = vector.broadcast %cst_95 : f32 to vector<8x128xf32>
    %128 = arith.cmpf oge, %126, %127 : vector<8x128xf32>
    %cst_96 = arith.constant 2.000000e-01 : f32
    %129 = vector.broadcast %cst_96 : f32 to vector<8x128xf32>
    %130 = arith.mulf %129, %126 : vector<8x128xf32>
    %131 = arith.select %128, %126, %130 : vector<8x128xi1>, vector<8x128xf32>
    %132 = arith.addf %118, %131 : vector<8x128xf32>
    %cst_97 = arith.constant 0.707106769 : f32
    %133 = vector.broadcast %cst_97 : f32 to vector<8x128xf32>
    %134 = arith.mulf %132, %133 : vector<8x128xf32>
    %c0_98 = arith.constant 0 : index
    %c0_99 = arith.constant 0 : index
    %c0_100 = arith.constant 0 : index
    %135 = vector.load %arg7[%c0_98, %c0_99, %c0_100] : memref<1x8x128xf32, #tpu.memory_space<vmem>>, vector<1x8x128xf32>
    %136 = vector.shape_cast %135 : vector<1x8x128xf32> to vector<8x128xf32>
    %137 = vector.shape_cast %134 : vector<8x128xf32> to vector<1x8x128xf32>
    tpu.vector_store %arg7[%c0_98, %c0_99, %c0_100], %137 {strides = array<i32>} : memref<1x8x128xf32, #tpu.memory_space<vmem>>, vector<1x8x128xf32>,
    return
  }
  func.func @transform_0(%arg0: i32) -> (i32, i32, i32) {
    %c0_i32 = arith.constant 0 : i32
    %c0_i32_0 = arith.constant 0 : i32
    %c0_i32_1 = arith.constant 0 : i32
    return %arg0, %c0_i32, %c0_i32_0 : i32, i32, i32
  }
  func.func @transform_1(%arg0: i32) -> (i32, i32, i32) {
    %c0_i32 = arith.constant 0 : i32
    %c0_i32_0 = arith.constant 0 : i32
    %c0_i32_1 = arith.constant 0 : i32
    %c0_i32_2 = arith.constant 0 : i32
    return %c0_i32, %c0_i32_0, %c0_i32_1 : i32, i32, i32
  }
  func.func @transform_2(%arg0: i32) -> (i32, i32) {
    %c0_i32 = arith.constant 0 : i32
    %c0_i32_0 = arith.constant 0 : i32
    %c0_i32_1 = arith.constant 0 : i32
    return %c0_i32, %c0_i32_0 : i32, i32
  }
  func.func @transform_3(%arg0: i32) -> (i32, i32) {
    %c0_i32 = arith.constant 0 : i32
    %c0_i32_0 = arith.constant 0 : i32
    %c0_i32_1 = arith.constant 0 : i32
    return %c0_i32, %c0_i32_0 : i32, i32
  }
  func.func @transform_4(%arg0: i32) -> (i32, i32) {
    %c0_i32 = arith.constant 0 : i32
    %c0_i32_0 = arith.constant 0 : i32
    %c0_i32_1 = arith.constant 0 : i32
    return %c0_i32, %c0_i32_0 : i32, i32
  }
  func.func @transform_5(%arg0: i32) -> (i32, i32) {
    %c0_i32 = arith.constant 0 : i32
    %c0_i32_0 = arith.constant 0 : i32
    %c0_i32_1 = arith.constant 0 : i32
    return %c0_i32, %c0_i32_0 : i32, i32
  }
  func.func @transform_6(%arg0: i32) -> (i32, i32, i32) {
    %c0_i32 = arith.constant 0 : i32
    %c0_i32_0 = arith.constant 0 : i32
    %c0_i32_1 = arith.constant 0 : i32
    return %arg0, %c0_i32, %c0_i32_0 : i32, i32, i32
  }
}

</mosaic_0001>

<llo_original>
// kernel: tpu_custom_call.1
$region0: #{tpu_custom_call.1}
  #allocation0 [shape = 'u32[]', space=smem, size = 0x4, offset = 0x4, fixed_abs, tag = 'smem constant byte address 0x4 - core index']
  #allocation1 [shape = 'u32[144,128]{1,0:T(1,128)}', space=vmem, size = 0x12000, scoped, tag = 'internal scratch']
  #allocation2 [shape = 'bf16[80,512]{1,0:T(16,128)(2,1)}', space=vmem, size = 0x14000, scoped, tag = 'scratch operand']
  #allocation3 [shape = 'bf16[80,512]{1,0:T(16,128)(2,1)}', space=vmem, size = 0x14000, scoped, tag = 'scratch operand']
  %s0 = inlined_call_operand.hbm [shape: f32[2,8,512], index: 0, kind: input, shape index: {}]
  %s1 = inlined_call_operand.hbm [shape: f32[10,8,512], index: 1, kind: input, shape index: {}]
  %s2 = inlined_call_operand.hbm [shape: bf16[512,128], index: 2, kind: input, shape index: {}]
  %s3 = inlined_call_operand.vmem [shape: bf16[8,80], index: 3, kind: input, shape index: {}]
  %s4 = inlined_call_operand.vmem [shape: bf16[8,80], index: 4, kind: input, shape index: {}]
  %s5 = inlined_call_operand.vmem [shape: bf16[8,16], index: 5, kind: input, shape index: {}]
  %s6 = inlined_call_operand.hbm [shape: f32[2,8,128], index: 6, kind: output, shape index: {}]
  %s7 = sld [smem:[#allocation0]]
  $region69: #{tpu_custom_call.1} parent=0
    _
  %s9 = ssub.s32 1, %s7
  %s10 = scalar_select 0, %s9, %s7
  $region1: #{tpu_custom_call.1} parent=0
    #allocation4 [shape = 'u8[32768]{0}', space=vmem, size = 0x8000, scoped, tag = 'input window, operand 0']
    #allocation5 [shape = 's32[2]{0}', space=sflag, size = 0x8, scoped, tag = 'scoped memory for tpu_custom_call.1']
    #allocation6 [shape = 's32[2]{0}', space=sflag, size = 0x8, scoped, tag = 'scoped memory for tpu_custom_call.1']
    #allocation7 [shape = 'u8[163840]{0}', space=vmem, size = 0x28000, scoped, tag = 'input window, operand 1, single buffered']
    #allocation8 [shape = 's32[1]{0}', space=sflag, size = 0x4, scoped, tag = 'scoped memory for tpu_custom_call.1']
    #allocation9 [shape = 'u8[131072]{0}', space=vmem, size = 0x20000, scoped, tag = 'input window, operand 2, single buffered']
    #allocation10 [shape = 'u8[8192]{0}', space=vmem, size = 0x2000, scoped, tag = 'output window, operand 0']
    %11 = vsyncpa [#allocation5], 0
    %s12 = scalar_lea.sflag [#allocation5], 1
    %13 = vsyncpa %s12, 0
    %14 = vsyncpa [#allocation8], 0
    %15 = vsyncpa [#allocation6], 0
    %s16 = scalar_lea.sflag [#allocation6], 1
    %17 = vsyncpa %s16, 0
    loop: start=0, step=1, limit=4
    $region2: #{tpu_custom_call.1} parent=1 // loop_pre_header
      _
    $region3: #{tpu_custom_call.1} parent=1 // loop_header
      %s19 = sphi 0, %s23
      %p20 = scmp.ge.s32.totalorder %s19, 4
      %s29 = sphi 0, %s31
      %s32 = sphi 0, %s29
      %s33 = sphi 0, %s32
      %s49 = sphi 0, %s33
      %s53 = sphi 0, %s53
      %s55 = sphi 0, %s53
      %s56 = sphi 0, %s55
      %s70 = sphi 0, %s56
      %s74 = sphi 0, %s74
      %s76 = sphi 0, %s74
      %s77 = sphi 0, %s76
      %s91 = sphi 0, %s77
      %s95 = sphi 0, %s95
      %s97 = sphi 0, %s95
      %s98 = sphi 0, %s97
      %s112 = sphi 0, %s98
      %s116 = sphi 0, %s116
      %s118 = sphi 0, %s116
      %s119 = sphi 0, %s118
      %s133 = sphi 0, %s119
      %s137 = sphi 0, %s137
      %s139 = sphi 0, %s137
      %s140 = sphi 0, %s139
      %s154 = sphi 0, %s140
      %s160 = sphi 0, %s162
      %s163 = sphi 0, %s160
      %s164 = sphi 0, %s163
      %s180 = sphi 0, %s164
    $region4: #{tpu_custom_call.1} parent=1 // loop_header_branch
      %22 = sbr.rel (%p20) target = $region8
    $region5: #{tpu_custom_call.1} parent=1 // loop_body
      %s24 = ssub.s32 %s19, 1
      %s25 = ssub.s32 %s19, 2
      %s26 = sadd.s32 %s19, 1
      %s27 = ssub.s32 %s19, %s26
      %p28 = scmp.eq.s32.totalorder %s27, 0
      %s30 = sadd.s32 %s29, 1
      %s31 = scalar_select %p28, %s29, %s30
      %p34 = pneg %p28
      %p35 = scmp.eq.s32.totalorder %s19, 1
      %p36 = por %p34, %p35
      %p37 = scmp.ne.s32.totalorder %s29, %s32
      %p38 = scmp.eq.s32.totalorder %s19, 0
      %p39 = por %p37, %p38
      %p40 = scmp.ne.s32.totalorder %s29, %s32
      %p41 = scmp.eq.s32.totalorder %s24, 1
      %p42 = por %p40, %p41
      %p43 = scmp.ne.s32.totalorder %s32, %s33
      %p44 = scmp.eq.s32.totalorder %s24, 0
      %p45 = por %p43, %p44
      %p46 = scmp.ne.s32.totalorder %s32, %s33
      %p47 = scmp.eq.s32.totalorder %s25, 1
      %p48 = por %p46, %p47
      %p50 = scmp.ne.s32.totalorder %s33, %s49
      %p51 = scmp.eq.s32.totalorder %s25, 0
      %p52 = por %p50, %p51
      %s54 = sadd.s32 %s53, 1
      %p57 = scmp.eq.s32.totalorder %s19, 1
      %p58 = scmp.ne.s32.totalorder %s53, %s55
      %p59 = scmp.eq.s32.totalorder %s19, 0
      %p60 = por %p58, %p59
      %p61 = scmp.ne.s32.totalorder %s53, %s55
      %p62 = scmp.eq.s32.totalorder %s24, 1
      %p63 = por %p61, %p62
      %p64 = scmp.ne.s32.totalorder %s55, %s56
      %p65 = scmp.eq.s32.totalorder %s24, 0
      %p66 = por %p64, %p65
      %p67 = scmp.ne.s32.totalorder %s55, %s56
      %p68 = scmp.eq.s32.totalorder %s25, 1
      %p69 = por %p67, %p68
      %p71 = scmp.ne.s32.totalorder %s56, %s70
      %p72 = scmp.eq.s32.totalorder %s25, 0
      %p73 = por %p71, %p72
      %s75 = sadd.s32 %s74, 1
      %p78 = scmp.eq.s32.totalorder %s19, 1
      %p79 = scmp.ne.s32.totalorder %s74, %s76
      %p80 = scmp.eq.s32.totalorder %s19, 0
      %p81 = por %p79, %p80
      %p82 = scmp.ne.s32.totalorder %s74, %s76
      %p83 = scmp.eq.s32.totalorder %s24, 1
      %p84 = por %p82, %p83
      %p85 = scmp.ne.s32.totalorder %s76, %s77
      %p86 = scmp.eq.s32.totalorder %s24, 0
      %p87 = por %p85, %p86
      %p88 = scmp.ne.s32.totalorder %s76, %s77
      %p89 = scmp.eq.s32.totalorder %s25, 1
      %p90 = por %p88, %p89
      %p92 = scmp.ne.s32.totalorder %s77, %s91
      %p93 = scmp.eq.s32.totalorder %s25, 0
      %p94 = por %p92, %p93
      %s96 = sadd.s32 %s95, 1
      %p99 = scmp.eq.s32.totalorder %s19, 1
      %p100 = scmp.ne.s32.totalorder %s95, %s97
      %p101 = scmp.eq.s32.totalorder %s19, 0
      %p102 = por %p100, %p101
      %p103 = scmp.ne.s32.totalorder %s95, %s97
      %p104 = scmp.eq.s32.totalorder %s24, 1
      %p105 = por %p103, %p104
      %p106 = scmp.ne.s32.totalorder %s97, %s98
      %p107 = scmp.eq.s32.totalorder %s24, 0
      %p108 = por %p106, %p107
      %p109 = scmp.ne.s32.totalorder %s97, %s98
      %p110 = scmp.eq.s32.totalorder %s25, 1
      %p111 = por %p109, %p110
      %p113 = scmp.ne.s32.totalorder %s98, %s112
      %p114 = scmp.eq.s32.totalorder %s25, 0
      %p115 = por %p113, %p114
      %s117 = sadd.s32 %s116, 1
      %p120 = scmp.eq.s32.totalorder %s19, 1
      %p121 = scmp.ne.s32.totalorder %s116, %s118
      %p122 = scmp.eq.s32.totalorder %s19, 0
      %p123 = por %p121, %p122
      %p124 = scmp.ne.s32.totalorder %s116, %s118
      %p125 = scmp.eq.s32.totalorder %s24, 1
      %p126 = por %p124, %p125
      %p127 = scmp.ne.s32.totalorder %s118, %s119
      %p128 = scmp.eq.s32.totalorder %s24, 0
      %p129 = por %p127, %p128
      %p130 = scmp.ne.s32.totalorder %s118, %s119
      %p131 = scmp.eq.s32.totalorder %s25, 1
      %p132 = por %p130, %p131
      %p134 = scmp.ne.s32.totalorder %s119, %s133
      %p135 = scmp.eq.s32.totalorder %s25, 0
      %p136 = por %p134, %p135
      %s138 = sadd.s32 %s137, 1
      %p141 = scmp.eq.s32.totalorder %s19, 1
      %p142 = scmp.ne.s32.totalorder %s137, %s139
      %p143 = scmp.eq.s32.totalorder %s19, 0
      %p144 = por %p142, %p143
      %p145 = scmp.ne.s32.totalorder %s137, %s139
      %p146 = scmp.eq.s32.totalorder %s24, 1
      %p147 = por %p145, %p146
      %p148 = scmp.ne.s32.totalorder %s139, %s140
      %p149 = scmp.eq.s32.totalorder %s24, 0
      %p150 = por %p148, %p149
      %p151 = scmp.ne.s32.totalorder %s139, %s140
      %p152 = scmp.eq.s32.totalorder %s25, 1
      %p153 = por %p151, %p152
      %p155 = scmp.ne.s32.totalorder %s140, %s154
      %p156 = scmp.eq.s32.totalorder %s25, 0
      %p157 = por %p155, %p156
      %s158 = ssub.s32 %s19, %s26
      %p159 = scmp.eq.s32.totalorder %s158, 0
      %s161 = sadd.s32 %s160, 1
      %s162 = scalar_select %p159, %s160, %s161
      %p165 = pneg %p159
      %p166 = scmp.eq.s32.totalorder %s19, 1
      %p167 = por %p165, %p166
      %p168 = scmp.ne.s32.totalorder %s160, %s163
      %p169 = scmp.eq.s32.totalorder %s19, 0
      %p170 = por %p168, %p169
      %p171 = scmp.ne.s32.totalorder %s160, %s163
      %p172 = scmp.eq.s32.totalorder %s24, 1
      %p173 = por %p171, %p172
      %p174 = scmp.ne.s32.totalorder %s163, %s164
      %p175 = scmp.eq.s32.totalorder %s24, 0
      %p176 = por %p174, %p175
      %p177 = scmp.ne.s32.totalorder %s163, %s164
      %p178 = scmp.eq.s32.totalorder %s25, 1
      %p179 = por %p177, %p178
      %p181 = scmp.ne.s32.totalorder %s164, %s180
      %p182 = scmp.eq.s32.totalorder %s25, 0
      %p183 = por %p181, %p182
      %p184 = scmp.le.s32.totalorder 1, %s19
      %p185 = scmp.lt.s32.totalorder %s19, 3
      %p186 = pnand %p184, %p185
      %p187 = pneg %p186
      // Predicated region
      $region9: #{tpu_custom_call.1} parent=5 // pred_check
        _
      $region10: #{tpu_custom_call.1} parent=5 // pred_check_branch
        %189 = sbr.rel (%p186) target = $region12
      $region11: #{tpu_custom_call.1} parent=5 // pred_region
        %s190 = ssub.s32 %s19, 1
        // Predicated region
        $region13: #{tpu_custom_call.1} parent=11 // pred_check
          %p191 = pneg %p66
        $region14: #{tpu_custom_call.1} parent=11 // pred_check_branch
          %193 = sbr.rel (%p191) target = $region16
        $region15: #{tpu_custom_call.1} parent=11 // pred_region
          %s195 = ssub.s32 5120, 5120
          %196 = vsyncadd [#allocation8], %s195
          %s197 = sshll.u32 [#allocation7], 4
          %s198 = int_to_ptr.vmem [resolvable:$true] %s197
          %203 = dma.hbm_to_vmem [thread:$0]  %s1, 5120, %s198, [#allocation8], 512, 512, 32
        $region16: #{tpu_custom_call.1} parent=11 // pred_fallthru
          _
        // Predicated region
        $region17: #{tpu_custom_call.1} parent=11 // pred_check
          %p204 = pneg %p87
        $region18: #{tpu_custom_call.1} parent=11 // pred_check_branch
          %206 = sbr.rel (%p204) target = $region20
        $region19: #{tpu_custom_call.1} parent=11 // pred_region
          %s208 = ssub.s32 4096, 4096
          %209 = vsyncadd [#allocation8], %s208
          %s210 = sshll.u32 [#allocation9], 4
          %s211 = int_to_ptr.vmem [resolvable:$true] %s210
          %216 = dma.hbm_to_vmem [thread:$0]  %s2, 4096, %s211, [#allocation8], 64, 64, 4
        $region20: #{tpu_custom_call.1} parent=11 // pred_fallthru
          _
        // Predicated region
        $region21: #{tpu_custom_call.1} parent=11 // pred_check
          %p217 = pneg %p108
        $region22: #{tpu_custom_call.1} parent=11 // pred_check_branch
          %219 = sbr.rel (%p217) target = $region24
        $region23: #{tpu_custom_call.1} parent=11 // pred_region
          _
        $region24: #{tpu_custom_call.1} parent=11 // pred_fallthru
          _
        // Predicated region
        $region25: #{tpu_custom_call.1} parent=11 // pred_check
          %p220 = pneg %p129
        $region26: #{tpu_custom_call.1} parent=11 // pred_check_branch
          %222 = sbr.rel (%p220) target = $region28
        $region27: #{tpu_custom_call.1} parent=11 // pred_region
          _
        $region28: #{tpu_custom_call.1} parent=11 // pred_fallthru
          _
        // Predicated region
        $region29: #{tpu_custom_call.1} parent=11 // pred_check
          %p223 = pneg %p150
        $region30: #{tpu_custom_call.1} parent=11 // pred_check_branch
          %225 = sbr.rel (%p223) target = $region32
        $region31: #{tpu_custom_call.1} parent=11 // pred_region
          _
        $region32: #{tpu_custom_call.1} parent=11 // pred_fallthru
          _
      $region12: #{tpu_custom_call.1} parent=5 // pred_fallthru
        _
      %p226 = scmp.lt.s32.totalorder %s19, 2
      // Predicated region
      $region33: #{tpu_custom_call.1} parent=5 // pred_check
        %p227 = pneg %p226
      $region34: #{tpu_custom_call.1} parent=5 // pred_check_branch
        %229 = sbr.rel (%p227) target = $region36
      $region35: #{tpu_custom_call.1} parent=5 // pred_region
        // Predicated region
        $region37: #{tpu_custom_call.1} parent=35 // pred_check
          %p230 = pneg %p39
        $region38: #{tpu_custom_call.1} parent=35 // pred_check_branch
          %232 = sbr.rel (%p230) target = $region40
        $region39: #{tpu_custom_call.1} parent=35 // pred_region
          %s233 = sand.u32 %s29, 1
          %s234 = scalar_lea.sflag [#allocation5], %s233
          %s235 = sand.u32 %s29, 1
          %s236 = smul.addr %s235, 32
          %s237 = scalar_lea.vmem [#allocation4], %s236
          %s239 = ssub.s32 512, 512
          %240 = vsyncadd %s234, %s239
          %s241 = smul.addr %s19, 4
          %s242 = smul.addr %s241, 128
          %s243 = scalar_lea.hbm %s0, %s242
          %s245 = sshll.u32 %s237, 4
          %s246 = int_to_ptr.vmem [resolvable:$true] %s245
          %248 = dma.hbm_to_vmem [thread:$0]  %s243, 512, %s246, %s234
        $region40: #{tpu_custom_call.1} parent=35 // pred_fallthru
          _
      $region36: #{tpu_custom_call.1} parent=5 // pred_fallthru
        _
      %p249 = scmp.le.s32.totalorder 1, %s19
      %p250 = scmp.lt.s32.totalorder %s19, 3
      %p251 = pnand %p249, %p250
      %p252 = pneg %p251
      // Predicated region
      $region41: #{tpu_custom_call.1} parent=5 // pred_check
        _
      $region42: #{tpu_custom_call.1} parent=5 // pred_check_branch
        %254 = sbr.rel (%p251) target = $region44
      $region43: #{tpu_custom_call.1} parent=5 // pred_region
        %s255 = ssub.s32 %s19, 1
        %s256 = sand.u32 %s32, 1
        %s257 = scalar_lea.sflag [#allocation5], %s256
        %s258 = sand.u32 %s32, 1
        %s259 = smul.addr %s258, 32
        %s260 = scalar_lea.vmem [#allocation4], %s259
        // Predicated region
        $region45: #{tpu_custom_call.1} parent=43 // pred_check
          %p261 = pneg %p45
        $region46: #{tpu_custom_call.1} parent=43 // pred_check_branch
          %263 = sbr.rel (%p261) target = $region48
        $region47: #{tpu_custom_call.1} parent=43 // pred_region
          %264 = dma.done %s257, 512
        $region48: #{tpu_custom_call.1} parent=43 // pred_fallthru
          _
        // Predicated region
        $region49: #{tpu_custom_call.1} parent=43 // pred_check
          %p265 = pneg %p66
        $region50: #{tpu_custom_call.1} parent=43 // pred_check_branch
          %267 = sbr.rel (%p265) target = $region52
        $region51: #{tpu_custom_call.1} parent=43 // pred_region
          %268 = dma.done [#allocation8], 5120
        $region52: #{tpu_custom_call.1} parent=43 // pred_fallthru
          _
        // Predicated region
        $region53: #{tpu_custom_call.1} parent=43 // pred_check
          %p269 = pneg %p87
        $region54: #{tpu_custom_call.1} parent=43 // pred_check_branch
          %271 = sbr.rel (%p269) target = $region56
        $region55: #{tpu_custom_call.1} parent=43 // pred_region
          %272 = dma.done [#allocation8], 4096
        $region56: #{tpu_custom_call.1} parent=43 // pred_fallthru
          _
        %s273 = sand.u32 %s32, 1
        %s274 = scalar_lea.sflag [#allocation5], %s273
        %s275 = sand.u32 %s32, 1
        %s276 = smul.addr %s275, 32
        %s277 = scalar_lea.vmem [#allocation4], %s276
        %p278 = pneg %p45
        %p279 = pneg %p42
        %p280 = pneg %p66
        %p281 = pneg %p63
        %p282 = pneg %p87
        %p283 = pneg %p84
        %p284 = pneg %p108
        %p285 = pneg %p105
        %p286 = pneg %p129
        %p287 = pneg %p126
        %p288 = pneg %p150
        %p289 = pneg %p147
        %p290 = pneg %p176
        %p291 = pneg %p173
        %s292 = sand.u32 %s163, 1
        %s293 = scalar_lea.sflag [#allocation6], %s292
        %s294 = sand.u32 %s163, 1
        %s295 = smul.addr %s294, 8
        %s296 = scalar_lea.vmem [#allocation10], %s295
        %v298 = vld [vmem:[%s260] sm:$0xff]
        %v299 = vld [vmem:[%s260 + $0x8] sm:$0xff]
        %v300 = vld [vmem:[%s260 + $0x10] sm:$0xff]
        %v301 = vld [vmem:[%s260 + $0x18] sm:$0xff]
        %302 = vrot.lane.b32.xlu0 %v298, 17
        %v303 = vpop.permute.xlu0 %302
        %304 = vrot.lane.b32.xlu0 %v299, 17
        %v305 = vpop.permute.xlu0 %304
        %306 = vrot.lane.b32.xlu0 %v300, 17
        %v307 = vpop.permute.xlu0 %306
        %308 = vrot.lane.b32.xlu0 %v301, 17
        %v309 = vpop.permute.xlu0 %308
        %v310 = vlaneseq
        %v311 = vand.u32 %v310, 127
        %vm312 = vcmp.lt.s32.totalorder %v311, 17
        %v313 = vsel %vm312, %v307, %v309
        %v314 = vsel %vm312, %v305, %v307
        %v315 = vsel %vm312, %v303, %v305
        %v316 = vsel %vm312, %v309, %v303
        %v317 = vld [vmem:[#allocation7] sm:$0xff]
        %v318 = vld [vmem:[#allocation7 + $0x8] sm:$0xff]
        %v319 = vld [vmem:[#allocation7 + $0x10] sm:$0xff]
        %v320 = vld [vmem:[#allocation7 + $0x18] sm:$0xff]
        %v321 = vmul.f32 %v316, %v317
        %v322 = vmul.f32 %v315, %v318
        %v323 = vmul.f32 %v314, %v319
        %v324 = vmul.f32 %v313, %v320
        %325 = vrot.lane.b32.xlu0 %v298, 16
        %v326 = vpop.permute.xlu0 %325
        %327 = vrot.lane.b32.xlu0 %v299, 16
        %v328 = vpop.permute.xlu0 %327
        %329 = vrot.lane.b32.xlu0 %v300, 16
        %v330 = vpop.permute.xlu0 %329
        %331 = vrot.lane.b32.xlu0 %v301, 16
        %v332 = vpop.permute.xlu0 %331
        %vm333 = vcmp.lt.s32.totalorder %v311, 16
        %v334 = vsel %vm333, %v330, %v332
        %v335 = vsel %vm333, %v328, %v330
        %v336 = vsel %vm333, %v326, %v328
        %v337 = vsel %vm333, %v332, %v326
        %s338 = scalar_lea.vmem [#allocation7], 32
        %v339 = vld [vmem:[%s338] sm:$0xff]
        %v340 = vld [vmem:[%s338 + $0x8] sm:$0xff]
        %v341 = vld [vmem:[%s338 + $0x10] sm:$0xff]
        %v342 = vld [vmem:[%s338 + $0x18] sm:$0xff]
        %v343 = vmul.f32 %v337, %v339
        %v344 = vmul.f32 %v336, %v340
        %v345 = vmul.f32 %v335, %v341
        %v346 = vmul.f32 %v334, %v342
        %347 = vrot.lane.b32.xlu0 %v298, 15
        %v348 = vpop.permute.xlu0 %347
        %349 = vrot.lane.b32.xlu0 %v299, 15
        %v350 = vpop.permute.xlu0 %349
        %351 = vrot.lane.b32.xlu0 %v300, 15
        %v352 = vpop.permute.xlu0 %351
        %353 = vrot.lane.b32.xlu0 %v301, 15
        %v354 = vpop.permute.xlu0 %353
        %vm355 = vcmp.lt.s32.totalorder %v311, 15
        %v356 = vsel %vm355, %v352, %v354
        %v357 = vsel %vm355, %v350, %v352
        %v358 = vsel %vm355, %v348, %v350
        %v359 = vsel %vm355, %v354, %v348
        %s360 = scalar_lea.vmem [#allocation7], 64
        %v361 = vld [vmem:[%s360] sm:$0xff]
        %v362 = vld [vmem:[%s360 + $0x8] sm:$0xff]
        %v363 = vld [vmem:[%s360 + $0x10] sm:$0xff]
        %v364 = vld [vmem:[%s360 + $0x18] sm:$0xff]
        %v365 = vmul.f32 %v359, %v361
        %v366 = vmul.f32 %v358, %v362
        %v367 = vmul.f32 %v357, %v363
        %v368 = vmul.f32 %v356, %v364
        %369 = vrot.lane.b32.xlu0 %v298, 1
        %v370 = vpop.permute.xlu0 %369
        %371 = vrot.lane.b32.xlu0 %v299, 1
        %v372 = vpop.permute.xlu0 %371
        %373 = vrot.lane.b32.xlu0 %v300, 1
        %v374 = vpop.permute.xlu0 %373
        %375 = vrot.lane.b32.xlu0 %v301, 1
        %v376 = vpop.permute.xlu0 %375
        %vm377 = vcmp.lt.s32.totalorder %v311, 1
        %v378 = vsel %vm377, %v374, %v376
        %v379 = vsel %vm377, %v372, %v374
        %v380 = vsel %vm377, %v370, %v372
        %v381 = vsel %vm377, %v376, %v370
        %s382 = scalar_lea.vmem [#allocation7], 96
        %v383 = vld [vmem:[%s382] sm:$0xff]
        %v384 = vld [vmem:[%s382 + $0x8] sm:$0xff]
        %v385 = vld [vmem:[%s382 + $0x10] sm:$0xff]
        %v386 = vld [vmem:[%s382 + $0x18] sm:$0xff]
        %v387 = vmul.f32 %v381, %v383
        %v388 = vmul.f32 %v380, %v384
        %v389 = vmul.f32 %v379, %v385
        %v390 = vmul.f32 %v378, %v386
        %391 = vrot.lane.b32.xlu0 %v298, 127
        %v392 = vpop.permute.xlu0 %391
        %393 = vrot.lane.b32.xlu0 %v299, 127
        %v394 = vpop.permute.xlu0 %393
        %395 = vrot.lane.b32.xlu0 %v300, 127
        %v396 = vpop.permute.xlu0 %395
        %397 = vrot.lane.b32.xlu0 %v301, 127
        %v398 = vpop.permute.xlu0 %397
        %vm399 = vcmp.lt.s32.totalorder %v311, 127
        %v400 = vsel %vm399, %v396, %v398
        %v401 = vsel %vm399, %v394, %v396
        %v402 = vsel %vm399, %v392, %v394
        %v403 = vsel %vm399, %v398, %v392
        %s404 = scalar_lea.vmem [#allocation7], 160
        %v405 = vld [vmem:[%s404] sm:$0xff]
        %v406 = vld [vmem:[%s404 + $0x8] sm:$0xff]
        %v407 = vld [vmem:[%s404 + $0x10] sm:$0xff]
        %v408 = vld [vmem:[%s404 + $0x18] sm:$0xff]
        %v409 = vmul.f32 %v402, %v405
        %v410 = vmul.f32 %v401, %v406
        %v411 = vmul.f32 %v400, %v407
        %v412 = vmul.f32 %v403, %v408
        %413 = vrot.lane.b32.xlu0 %v298, 113
        %v414 = vpop.permute.xlu0 %413
        %415 = vrot.lane.b32.xlu0 %v299, 113
        %v416 = vpop.permute.xlu0 %415
        %417 = vrot.lane.b32.xlu0 %v300, 113
        %v418 = vpop.permute.xlu0 %417
        %419 = vrot.lane.b32.xlu0 %v301, 113
        %v420 = vpop.permute.xlu0 %419
        %vm421 = vcmp.lt.s32.totalorder %v311, 113
        %v422 = vsel %vm421, %v418, %v420
        %v423 = vsel %vm421, %v416, %v418
        %v424 = vsel %vm421, %v414, %v416
        %v425 = vsel %vm421, %v420, %v414
        %s426 = scalar_lea.vmem [#allocation7], 192
        %v427 = vld [vmem:[%s426] sm:$0xff]
        %v428 = vld [vmem:[%s426 + $0x8] sm:$0xff]
        %v429 = vld [vmem:[%s426 + $0x10] sm:$0xff]
        %v430 = vld [vmem:[%s426 + $0x18] sm:$0xff]
        %v431 = vmul.f32 %v424, %v427
        %v432 = vmul.f32 %v423, %v428
        %v433 = vmul.f32 %v422, %v429
        %v434 = vmul.f32 %v425, %v430
        %435 = vrot.lane.b32.xlu0 %v298, 112
        %v436 = vpop.permute.xlu0 %435
        %437 = vrot.lane.b32.xlu0 %v299, 112
        %v438 = vpop.permute.xlu0 %437
        %439 = vrot.lane.b32.xlu0 %v300, 112
        %v440 = vpop.permute.xlu0 %439
        %441 = vrot.lane.b32.xlu0 %v301, 112
        %v442 = vpop.permute.xlu0 %441
        %vm443 = vcmp.lt.s32.totalorder %v311, 112
        %v444 = vsel %vm443, %v440, %v442
        %v445 = vsel %vm443, %v438, %v440
        %v446 = vsel %vm443, %v436, %v438
        %v447 = vsel %vm443, %v442, %v436
        %s448 = scalar_lea.vmem [#allocation7], 224
        %v449 = vld [vmem:[%s448] sm:$0xff]
        %v450 = vld [vmem:[%s448 + $0x8] sm:$0xff]
        %v451 = vld [vmem:[%s448 + $0x10] sm:$0xff]
        %v452 = vld [vmem:[%s448 + $0x18] sm:$0xff]
        %v453 = vmul.f32 %v446, %v449
        %v454 = vmul.f32 %v445, %v450
        %v455 = vmul.f32 %v444, %v451
        %v456 = vmul.f32 %v447, %v452
        %457 = vrot.lane.b32.xlu0 %v298, 111
        %v458 = vpop.permute.xlu0 %457
        %459 = vrot.lane.b32.xlu0 %v299, 111
        %v460 = vpop.permute.xlu0 %459
        %461 = vrot.lane.b32.xlu0 %v300, 111
        %v462 = vpop.permute.xlu0 %461
        %463 = vrot.lane.b32.xlu0 %v301, 111
        %v464 = vpop.permute.xlu0 %463
        %vm465 = vcmp.lt.s32.totalorder %v311, 111
        %v466 = vsel %vm465, %v462, %v464
        %v467 = vsel %vm465, %v460, %v462
        %v468 = vsel %vm465, %v458, %v460
        %v469 = vsel %vm465, %v464, %v458
        %s470 = scalar_lea.vmem [#allocation7], 256
        %v471 = vld [vmem:[%s470] sm:$0xff]
        %v472 = vld [vmem:[%s470 + $0x8] sm:$0xff]
        %v473 = vld [vmem:[%s470 + $0x10] sm:$0xff]
        %v474 = vld [vmem:[%s470 + $0x18] sm:$0xff]
        %v475 = vmul.f32 %v468, %v471
        %v476 = vmul.f32 %v467, %v472
        %v477 = vmul.f32 %v466, %v473
        %v478 = vmul.f32 %v469, %v474
        %s479 = scalar_lea.vmem [#allocation7], 288
        %v480 = vld [vmem:[%s479] sm:$0xff]
        %v481 = vld [vmem:[%s479 + $0x8] sm:$0xff]
        %v482 = vld [vmem:[%s479 + $0x10] sm:$0xff]
        %v483 = vld [vmem:[%s479 + $0x18] sm:$0xff]
        %v484 = vpack.c.bf16 %v343, %v321
        %v485 = vpack.c.bf16 %v344, %v322
        %v486 = vpack.c.bf16 %v345, %v323
        %v487 = vpack.c.bf16 %v346, %v324
        %488 = vst [vmem:[#allocation2] sm:$0xff] %v484
        %489 = vst [vmem:[#allocation2 + $0x8] sm:$0xff] %v485
        %490 = vst [vmem:[#allocation2 + $0x10] sm:$0xff] %v486
        %491 = vst [vmem:[#allocation2 + $0x18] sm:$0xff] %v487
        %v492 = vpack.c.bf16 %v387, %v365
        %v493 = vpack.c.bf16 %v388, %v366
        %v494 = vpack.c.bf16 %v389, %v367
        %v495 = vpack.c.bf16 %v390, %v368
        %496 = vst [vmem:[#allocation2 + $0x20] sm:$0xff] %v492
        %497 = vst [vmem:[#allocation2 + $0x28] sm:$0xff] %v493
        %498 = vst [vmem:[#allocation2 + $0x30] sm:$0xff] %v494
        %499 = vst [vmem:[#allocation2 + $0x38] sm:$0xff] %v495
        %v500 = vpack.c.bf16 %v409, %v298
        %v501 = vpack.c.bf16 %v410, %v299
        %v502 = vpack.c.bf16 %v411, %v300
        %v503 = vpack.c.bf16 %v412, %v301
        %504 = vst [vmem:[#allocation2 + $0x40] sm:$0xff] %v500
        %505 = vst [vmem:[#allocation2 + $0x48] sm:$0xff] %v501
        %506 = vst [vmem:[#allocation2 + $0x50] sm:$0xff] %v502
        %507 = vst [vmem:[#allocation2 + $0x58] sm:$0xff] %v503
        %v508 = vpack.c.bf16 %v453, %v431
        %v509 = vpack.c.bf16 %v454, %v432
        %v510 = vpack.c.bf16 %v455, %v433
        %v511 = vpack.c.bf16 %v456, %v434
        %512 = vst [vmem:[#allocation2 + $0x60] sm:$0xff] %v508
        %513 = vst [vmem:[#allocation2 + $0x68] sm:$0xff] %v509
        %514 = vst [vmem:[#allocation2 + $0x70] sm:$0xff] %v510
        %515 = vst [vmem:[#allocation2 + $0x78] sm:$0xff] %v511
        %v516 = vpack.c.bf16 %v480, %v475
        %v517 = vpack.c.bf16 %v481, %v476
        %v518 = vpack.c.bf16 %v482, %v477
        %v519 = vpack.c.bf16 %v483, %v478
        %520 = vst [vmem:[#allocation2 + $0x80] sm:$0xff] %v516
        %521 = vst [vmem:[#allocation2 + $0x88] sm:$0xff] %v517
        %522 = vst [vmem:[#allocation2 + $0x90] sm:$0xff] %v518
        %523 = vst [vmem:[#allocation2 + $0x98] sm:$0xff] %v519
        %v524 = vld [vmem:[%s3] sm:$0xf]
        %v525 = vld [vmem:[#allocation2] sm:$0xff]
        %v526 = vld [vmem:[#allocation2 + $0x8] sm:$0xff]
        %v527 = vld [vmem:[#allocation2 + $0x10] sm:$0xff]
        %v528 = vld [vmem:[#allocation2 + $0x18] sm:$0xff]
        %v529 = vld [vmem:[#allocation2 + $0x20] sm:$0xff]
        %v530 = vld [vmem:[#allocation2 + $0x28] sm:$0xff]
        %v531 = vld [vmem:[#allocation2 + $0x30] sm:$0xff]
        %v532 = vld [vmem:[#allocation2 + $0x38] sm:$0xff]
        %v533 = vld [vmem:[#allocation2 + $0x40] sm:$0xff]
        %v534 = vld [vmem:[#allocation2 + $0x48] sm:$0xff]
        %v535 = vld [vmem:[#allocation2 + $0x50] sm:$0xff]
        %v536 = vld [vmem:[#allocation2 + $0x58] sm:$0xff]
        %v537 = vld [vmem:[#allocation2 + $0x60] sm:$0xff]
        %v538 = vld [vmem:[#allocation2 + $0x68] sm:$0xff]
        %v539 = vld [vmem:[#allocation2 + $0x70] sm:$0xff]
        %v540 = vld [vmem:[#allocation2 + $0x78] sm:$0xff]
        %v541 = vld [vmem:[#allocation2 + $0x80] sm:$0xff]
        %v542 = vld [vmem:[#allocation2 + $0x88] sm:$0xff]
        %v543 = vld [vmem:[#allocation2 + $0x90] sm:$0xff]
        %v544 = vld [vmem:[#allocation2 + $0x98] sm:$0xff]
        %vm545 = vcmask 654336
        %v547 = vsel %vm545, %v524, 0
        %549 = vmatprep.subr.bf16.mxu0 %v526
        %550 = vmatpush1.bf16.msra.mxu0 %v525
        %551 = vmatprep.subr.bf16.mxu0 %v530
        %552 = vmatpush1.bf16.msra.mxu0 %v529
        %553 = vmatprep.subr.bf16.mxu0 %v534
        %554 = vmatpush1.bf16.msra.mxu0 %v533
        %555 = vmatprep.subr.bf16.mxu0 %v538
        %556 = vmatpush1.bf16.msra.mxu0 %v537
        %557 = vmatprep.subr.bf16.mxu0 %v542
        %558 = vmatpush1.bf16.msra.mxu0 %v541
        %559 = vmatprep.subr.bf16.mxu0 0
        %560 = vmatpush1.bf16.msra.mxu0 0
        %561 = vmatprep.subr.bf16.mxu0 0
        %562 = vmatpush1.bf16.msra.mxu0 0
        %563 = vmatprep.subr.bf16.mxu0 0
        %564 = vmatpush1.bf16.msra.mxu0 0
        %565 = vmatprep.subr.bf16.mxu0 0
        %566 = vmatpush1.bf16.msra.mxu0 0
        %567 = vmatprep.subr.bf16.mxu0 0
        %568 = vmatpush1.bf16.msra.mxu0 0
        %569 = vmatprep.subr.bf16.mxu0 0
        %570 = vmatpush1.bf16.msra.mxu0 0
        %571 = vmatprep.subr.bf16.mxu0 0
        %572 = vmatpush1.bf16.msra.mxu0 0
        %573 = vmatprep.subr.bf16.mxu0 0
        %574 = vmatpush1.bf16.msra.mxu0 0
        %575 = vmatprep.subr.bf16.mxu0 0
        %576 = vmatpush1.bf16.msra.mxu0 0
        %577 = vmatprep.subr.bf16.mxu0 0
        %578 = vmatpush1.bf16.msra.mxu0 0
        %579 = vmatprep.subr.bf16.mxu0 0
        %580 = vmatpush1.bf16.msra.mxu0 0
        %581 = vmatprep.mubr.bf16.mxu0 0
        %582 = vmatmul.mubr.bf16.gmra.mrb[0].mxu0 %v547
        %v583 = vpop.f32.mrb[0].mxu0
        %v584 = vadd.f32 0.0, %v583
        %v585 = vpop.f32.mrb[0].mxu0
        %v586 = vadd.f32 0.0, %v585
        %v587 = vpop.f32.mrb[0].mxu0
        %v588 = vpop.f32.mrb[0].mxu0
        %589 = vdwg.mxu0
        %590 = vmatprep.subr.bf16.mxu0 %v528
        %591 = vmatpush1.bf16.msra.mxu0 %v527
        %592 = vmatprep.subr.bf16.mxu0 %v532
        %593 = vmatpush1.bf16.msra.mxu0 %v531
        %594 = vmatprep.subr.bf16.mxu0 %v536
        %595 = vmatpush1.bf16.msra.mxu0 %v535
        %596 = vmatprep.subr.bf16.mxu0 %v540
        %597 = vmatpush1.bf16.msra.mxu0 %v539
        %598 = vmatprep.subr.bf16.mxu0 %v544
        %599 = vmatpush1.bf16.msra.mxu0 %v543
        %600 = vmatprep.subr.bf16.mxu0 0
        %601 = vmatpush1.bf16.msra.mxu0 0
        %602 = vmatprep.subr.bf16.mxu0 0
        %603 = vmatpush1.bf16.msra.mxu0 0
        %604 = vmatprep.subr.bf16.mxu0 0
        %605 = vmatpush1.bf16.msra.mxu0 0
        %606 = vmatprep.subr.bf16.mxu0 0
        %607 = vmatpush1.bf16.msra.mxu0 0
        %608 = vmatprep.subr.bf16.mxu0 0
        %609 = vmatpush1.bf16.msra.mxu0 0
        %610 = vmatprep.subr.bf16.mxu0 0
        %611 = vmatpush1.bf16.msra.mxu0 0
        %612 = vmatprep.subr.bf16.mxu0 0
        %613 = vmatpush1.bf16.msra.mxu0 0
        %614 = vmatprep.subr.bf16.mxu0 0
        %615 = vmatpush1.bf16.msra.mxu0 0
        %616 = vmatprep.subr.bf16.mxu0 0
        %617 = vmatpush1.bf16.msra.mxu0 0
        %618 = vmatprep.subr.bf16.mxu0 0
        %619 = vmatpush1.bf16.msra.mxu0 0
        %620 = vmatprep.subr.bf16.mxu0 0
        %621 = vmatpush1.bf16.msra.mxu0 0
        %622 = vmatprep.mubr.bf16.mxu0 0
        %623 = vmatmul.mubr.bf16.gmra.mrb[0].mxu0 %v547
        %v624 = vpop.f32.mrb[0].mxu0
        %v625 = vadd.f32 0.0, %v624
        %v626 = vpop.f32.mrb[0].mxu0
        %v627 = vadd.f32 0.0, %v626
        %v628 = vpop.f32.mrb[0].mxu0
        %v629 = vpop.f32.mrb[0].mxu0
        %630 = vdwg.mxu0
        %vm631 = vcmp.ge.f32.partialorder %v584, 0.0
        %vm632 = vcmp.ge.f32.partialorder %v586, 0.0
        %vm633 = vcmp.ge.f32.partialorder %v625, 0.0
        %vm634 = vcmp.ge.f32.partialorder %v627, 0.0
        %v635 = vmul.f32 %v584, 0.2
        %v636 = vmul.f32 %v586, 0.2
        %v637 = vmul.f32 %v625, 0.2
        %v638 = vmul.f32 %v627, 0.2
        %v639 = vsel %vm631, %v584, %v635
        %v640 = vsel %vm632, %v586, %v636
        %v641 = vsel %vm633, %v625, %v637
        %v642 = vsel %vm634, %v627, %v638
        %643 = vrot.lane.b32.xlu0 %v639, 17
        %v644 = vpop.permute.xlu0 %643
        %645 = vrot.lane.b32.xlu0 %v640, 17
        %v646 = vpop.permute.xlu0 %645
        %647 = vrot.lane.b32.xlu0 %v641, 17
        %v648 = vpop.permute.xlu0 %647
        %649 = vrot.lane.b32.xlu0 %v642, 17
        %v650 = vpop.permute.xlu0 %649
        %v651 = vsel %vm312, %v648, %v650
        %v652 = vsel %vm312, %v646, %v648
        %v653 = vsel %vm312, %v644, %v646
        %v654 = vsel %vm312, %v650, %v644
        %v655 = vld [vmem:[#allocation7] sm:$0xff]
        %v656 = vld [vmem:[#allocation7 + $0x8] sm:$0xff]
        %v657 = vld [vmem:[#allocation7 + $0x10] sm:$0xff]
        %v658 = vld [vmem:[#allocation7 + $0x18] sm:$0xff]
        %v659 = vmul.f32 %v654, %v655
        %v660 = vmul.f32 %v653, %v656
        %v661 = vmul.f32 %v652, %v657
        %v662 = vmul.f32 %v651, %v658
        %663 = vrot.lane.b32.xlu0 %v639, 16
        %v664 = vpop.permute.xlu0 %663
        %665 = vrot.lane.b32.xlu0 %v640, 16
        %v666 = vpop.permute.xlu0 %665
        %667 = vrot.lane.b32.xlu0 %v641, 16
        %v668 = vpop.permute.xlu0 %667
        %669 = vrot.lane.b32.xlu0 %v642, 16
        %v670 = vpop.permute.xlu0 %669
        %v671 = vsel %vm333, %v668, %v670
        %v672 = vsel %vm333, %v666, %v668
        %v673 = vsel %vm333, %v664, %v666
        %v674 = vsel %vm333, %v670, %v664
        %v675 = vld [vmem:[%s338] sm:$0xff]
        %v676 = vld [vmem:[%s338 + $0x8] sm:$0xff]
        %v677 = vld [vmem:[%s338 + $0x10] sm:$0xff]
        %v678 = vld [vmem:[%s338 + $0x18] sm:$0xff]
        %v679 = vmul.f32 %v674, %v675
        %v680 = vmul.f32 %v673, %v676
        %v681 = vmul.f32 %v672, %v677
        %v682 = vmul.f32 %v671, %v678
        %683 = vrot.lane.b32.xlu0 %v639, 15
        %v684 = vpop.permute.xlu0 %683
        %685 = vrot.lane.b32.xlu0 %v640, 15
        %v686 = vpop.permute.xlu0 %685
        %687 = vrot.lane.b32.xlu0 %v641, 15
        %v688 = vpop.permute.xlu0 %687
        %689 = vrot.lane.b32.xlu0 %v642, 15
        %v690 = vpop.permute.xlu0 %689
        %v691 = vsel %vm355, %v688, %v690
        %v692 = vsel %vm355, %v686, %v688
        %v693 = vsel %vm355, %v684, %v686
        %v694 = vsel %vm355, %v690, %v684
        %v695 = vld [vmem:[%s360] sm:$0xff]
        %v696 = vld [vmem:[%s360 + $0x8] sm:$0xff]
        %v697 = vld [vmem:[%s360 + $0x10] sm:$0xff]
        %v698 = vld [vmem:[%s360 + $0x18] sm:$0xff]
        %v699 = vmul.f32 %v694, %v695
        %v700 = vmul.f32 %v693, %v696
        %v701 = vmul.f32 %v692, %v697
        %v702 = vmul.f32 %v691, %v698
        %703 = vrot.lane.b32.xlu0 %v639, 1
        %v704 = vpop.permute.xlu0 %703
        %705 = vrot.lane.b32.xlu0 %v640, 1
        %v706 = vpop.permute.xlu0 %705
        %707 = vrot.lane.b32.xlu0 %v641, 1
        %v708 = vpop.permute.xlu0 %707
        %709 = vrot.lane.b32.xlu0 %v642, 1
        %v710 = vpop.permute.xlu0 %709
        %v711 = vsel %vm377, %v708, %v710
        %v712 = vsel %vm377, %v706, %v708
        %v713 = vsel %vm377, %v704, %v706
        %v714 = vsel %vm377, %v710, %v704
        %v715 = vld [vmem:[%s382] sm:$0xff]
        %v716 = vld [vmem:[%s382 + $0x8] sm:$0xff]
        %v717 = vld [vmem:[%s382 + $0x10] sm:$0xff]
        %v718 = vld [vmem:[%s382 + $0x18] sm:$0xff]
        %v719 = vmul.f32 %v714, %v715
        %v720 = vmul.f32 %v713, %v716
        %v721 = vmul.f32 %v712, %v717
        %v722 = vmul.f32 %v711, %v718
        %723 = vrot.lane.b32.xlu0 %v639, 127
        %v724 = vpop.permute.xlu0 %723
        %725 = vrot.lane.b32.xlu0 %v640, 127
        %v726 = vpop.permute.xlu0 %725
        %727 = vrot.lane.b32.xlu0 %v641, 127
        %v728 = vpop.permute.xlu0 %727
        %729 = vrot.lane.b32.xlu0 %v642, 127
        %v730 = vpop.permute.xlu0 %729
        %v731 = vsel %vm399, %v728, %v730
        %v732 = vsel %vm399, %v726, %v728
        %v733 = vsel %vm399, %v724, %v726
        %v734 = vsel %vm399, %v730, %v724
        %v735 = vld [vmem:[%s404] sm:$0xff]
        %v736 = vld [vmem:[%s404 + $0x8] sm:$0xff]
        %v737 = vld [vmem:[%s404 + $0x10] sm:$0xff]
        %v738 = vld [vmem:[%s404 + $0x18] sm:$0xff]
        %v739 = vmul.f32 %v733, %v735
        %v740 = vmul.f32 %v732, %v736
        %v741 = vmul.f32 %v731, %v737
        %v742 = vmul.f32 %v734, %v738
        %743 = vrot.lane.b32.xlu0 %v639, 113
        %v744 = vpop.permute.xlu0 %743
        %745 = vrot.lane.b32.xlu0 %v640, 113
        %v746 = vpop.permute.xlu0 %745
        %747 = vrot.lane.b32.xlu0 %v641, 113
        %v748 = vpop.permute.xlu0 %747
        %749 = vrot.lane.b32.xlu0 %v642, 113
        %v750 = vpop.permute.xlu0 %749
        %v751 = vsel %vm421, %v748, %v750
        %v752 = vsel %vm421, %v746, %v748
        %v753 = vsel %vm421, %v744, %v746
        %v754 = vsel %vm421, %v750, %v744
        %v755 = vld [vmem:[%s426] sm:$0xff]
        %v756 = vld [vmem:[%s426 + $0x8] sm:$0xff]
        %v757 = vld [vmem:[%s426 + $0x10] sm:$0xff]
        %v758 = vld [vmem:[%s426 + $0x18] sm:$0xff]
        %v759 = vmul.f32 %v753, %v755
        %v760 = vmul.f32 %v752, %v756
        %v761 = vmul.f32 %v751, %v757
        %v762 = vmul.f32 %v754, %v758
        %763 = vrot.lane.b32.xlu0 %v639, 112
        %v764 = vpop.permute.xlu0 %763
        %765 = vrot.lane.b32.xlu0 %v640, 112
        %v766 = vpop.permute.xlu0 %765
        %767 = vrot.lane.b32.xlu0 %v641, 112
        %v768 = vpop.permute.xlu0 %767
        %769 = vrot.lane.b32.xlu0 %v642, 112
        %v770 = vpop.permute.xlu0 %769
        %v771 = vsel %vm443, %v768, %v770
        %v772 = vsel %vm443, %v766, %v768
        %v773 = vsel %vm443, %v764, %v766
        %v774 = vsel %vm443, %v770, %v764
        %v775 = vld [vmem:[%s448] sm:$0xff]
        %v776 = vld [vmem:[%s448 + $0x8] sm:$0xff]
        %v777 = vld [vmem:[%s448 + $0x10] sm:$0xff]
        %v778 = vld [vmem:[%s448 + $0x18] sm:$0xff]
        %v779 = vmul.f32 %v773, %v775
        %v780 = vmul.f32 %v772, %v776
        %v781 = vmul.f32 %v771, %v777
        %v782 = vmul.f32 %v774, %v778
        %783 = vrot.lane.b32.xlu0 %v639, 111
        %v784 = vpop.permute.xlu0 %783
        %785 = vrot.lane.b32.xlu0 %v640, 111
        %v786 = vpop.permute.xlu0 %785
        %787 = vrot.lane.b32.xlu0 %v641, 111
        %v788 = vpop.permute.xlu0 %787
        %789 = vrot.lane.b32.xlu0 %v642, 111
        %v790 = vpop.permute.xlu0 %789
        %v791 = vsel %vm465, %v788, %v790
        %v792 = vsel %vm465, %v786, %v788
        %v793 = vsel %vm465, %v784, %v786
        %v794 = vsel %vm465, %v790, %v784
        %v795 = vld [vmem:[%s470] sm:$0xff]
        %v796 = vld [vmem:[%s470 + $0x8] sm:$0xff]
        %v797 = vld [vmem:[%s470 + $0x10] sm:$0xff]
        %v798 = vld [vmem:[%s470 + $0x18] sm:$0xff]
        %v799 = vmul.f32 %v793, %v795
        %v800 = vmul.f32 %v792, %v796
        %v801 = vmul.f32 %v791, %v797
        %v802 = vmul.f32 %v794, %v798
        %v803 = vld [vmem:[%s479] sm:$0xff]
        %v804 = vld [vmem:[%s479 + $0x8] sm:$0xff]
        %v805 = vld [vmem:[%s479 + $0x10] sm:$0xff]
        %v806 = vld [vmem:[%s479 + $0x18] sm:$0xff]
        %v807 = vpack.c.bf16 %v679, %v659
        %v808 = vpack.c.bf16 %v680, %v660
        %v809 = vpack.c.bf16 %v681, %v661
        %v810 = vpack.c.bf16 %v682, %v662
        %811 = vst [vmem:[#allocation3] sm:$0xff] %v807
        %812 = vst [vmem:[#allocation3 + $0x8] sm:$0xff] %v808
        %813 = vst [vmem:[#allocation3 + $0x10] sm:$0xff] %v809
        %814 = vst [vmem:[#allocation3 + $0x18] sm:$0xff] %v810
        %v815 = vpack.c.bf16 %v719, %v699
        %v816 = vpack.c.bf16 %v720, %v700
        %v817 = vpack.c.bf16 %v721, %v701
        %v818 = vpack.c.bf16 %v722, %v702
        %819 = vst [vmem:[#allocation3 + $0x20] sm:$0xff] %v815
        %820 = vst [vmem:[#allocation3 + $0x28] sm:$0xff] %v816
        %821 = vst [vmem:[#allocation3 + $0x30] sm:$0xff] %v817
        %822 = vst [vmem:[#allocation3 + $0x38] sm:$0xff] %v818
        %v823 = vpack.c.bf16 %v739, %v639
        %v824 = vpack.c.bf16 %v740, %v640
        %v825 = vpack.c.bf16 %v741, %v641
        %v826 = vpack.c.bf16 %v742, %v642
        %827 = vst [vmem:[#allocation3 + $0x40] sm:$0xff] %v823
        %828 = vst [vmem:[#allocation3 + $0x48] sm:$0xff] %v824
        %829 = vst [vmem:[#allocation3 + $0x50] sm:$0xff] %v825
        %830 = vst [vmem:[#allocation3 + $0x58] sm:$0xff] %v826
        %v831 = vpack.c.bf16 %v779, %v759
        %v832 = vpack.c.bf16 %v780, %v760
        %v833 = vpack.c.bf16 %v781, %v761
        %v834 = vpack.c.bf16 %v782, %v762
        %835 = vst [vmem:[#allocation3 + $0x60] sm:$0xff] %v831
        %836 = vst [vmem:[#allocation3 + $0x68] sm:$0xff] %v832
        %837 = vst [vmem:[#allocation3 + $0x70] sm:$0xff] %v833
        %838 = vst [vmem:[#allocation3 + $0x78] sm:$0xff] %v834
        %v839 = vpack.c.bf16 %v803, %v799
        %v840 = vpack.c.bf16 %v804, %v800
        %v841 = vpack.c.bf16 %v805, %v801
        %v842 = vpack.c.bf16 %v806, %v802
        %843 = vst [vmem:[#allocation3 + $0x80] sm:$0xff] %v839
        %844 = vst [vmem:[#allocation3 + $0x88] sm:$0xff] %v840
        %845 = vst [vmem:[#allocation3 + $0x90] sm:$0xff] %v841
        %846 = vst [vmem:[#allocation3 + $0x98] sm:$0xff] %v842
        %v847 = vld [vmem:[%s4] sm:$0xf]
        %v848 = vld [vmem:[#allocation3] sm:$0xff]
        %v849 = vld [vmem:[#allocation3 + $0x8] sm:$0xff]
        %v850 = vld [vmem:[#allocation3 + $0x10] sm:$0xff]
        %v851 = vld [vmem:[#allocation3 + $0x18] sm:$0xff]
        %v852 = vld [vmem:[#allocation3 + $0x20] sm:$0xff]
        %v853 = vld [vmem:[#allocation3 + $0x28] sm:$0xff]
        %v854 = vld [vmem:[#allocation3 + $0x30] sm:$0xff]
        %v855 = vld [vmem:[#allocation3 + $0x38] sm:$0xff]
        %v856 = vld [vmem:[#allocation3 + $0x40] sm:$0xff]
        %v857 = vld [vmem:[#allocation3 + $0x48] sm:$0xff]
        %v858 = vld [vmem:[#allocation3 + $0x50] sm:$0xff]
        %v859 = vld [vmem:[#allocation3 + $0x58] sm:$0xff]
        %v860 = vld [vmem:[#allocation3 + $0x60] sm:$0xff]
        %v861 = vld [vmem:[#allocation3 + $0x68] sm:$0xff]
        %v862 = vld [vmem:[#allocation3 + $0x70] sm:$0xff]
        %v863 = vld [vmem:[#allocation3 + $0x78] sm:$0xff]
        %v864 = vld [vmem:[#allocation3 + $0x80] sm:$0xff]
        %v865 = vld [vmem:[#allocation3 + $0x88] sm:$0xff]
        %v866 = vld [vmem:[#allocation3 + $0x90] sm:$0xff]
        %v867 = vld [vmem:[#allocation3 + $0x98] sm:$0xff]
        %v869 = vsel %vm545, %v847, 0
        %871 = vmatprep.subr.bf16.mxu0 %v849
        %872 = vmatpush1.bf16.msra.mxu0 %v848
        %873 = vmatprep.subr.bf16.mxu0 %v853
        %874 = vmatpush1.bf16.msra.mxu0 %v852
        %875 = vmatprep.subr.bf16.mxu0 %v857
        %876 = vmatpush1.bf16.msra.mxu0 %v856
        %877 = vmatprep.subr.bf16.mxu0 %v861
        %878 = vmatpush1.bf16.msra.mxu0 %v860
        %879 = vmatprep.subr.bf16.mxu0 %v865
        %880 = vmatpush1.bf16.msra.mxu0 %v864
        %881 = vmatprep.subr.bf16.mxu0 0
        %882 = vmatpush1.bf16.msra.mxu0 0
        %883 = vmatprep.subr.bf16.mxu0 0
        %884 = vmatpush1.bf16.msra.mxu0 0
        %885 = vmatprep.subr.bf16.mxu0 0
        %886 = vmatpush1.bf16.msra.mxu0 0
        %887 = vmatprep.subr.bf16.mxu0 0
        %888 = vmatpush1.bf16.msra.mxu0 0
        %889 = vmatprep.subr.bf16.mxu0 0
        %890 = vmatpush1.bf16.msra.mxu0 0
        %891 = vmatprep.subr.bf16.mxu0 0
        %892 = vmatpush1.bf16.msra.mxu0 0
        %893 = vmatprep.subr.bf16.mxu0 0
        %894 = vmatpush1.bf16.msra.mxu0 0
        %895 = vmatprep.subr.bf16.mxu0 0
        %896 = vmatpush1.bf16.msra.mxu0 0
        %897 = vmatprep.subr.bf16.mxu0 0
        %898 = vmatpush1.bf16.msra.mxu0 0
        %899 = vmatprep.subr.bf16.mxu0 0
        %900 = vmatpush1.bf16.msra.mxu0 0
        %901 = vmatprep.subr.bf16.mxu0 0
        %902 = vmatpush1.bf16.msra.mxu0 0
        %903 = vmatprep.mubr.bf16.mxu0 0
        %904 = vmatmul.mubr.bf16.gmra.mrb[0].mxu0 %v869
        %v905 = vpop.f32.mrb[0].mxu0
        %v906 = vadd.f32 0.0, %v905
        %v907 = vpop.f32.mrb[0].mxu0
        %v908 = vadd.f32 0.0, %v907
        %v909 = vpop.f32.mrb[0].mxu0
        %v910 = vpop.f32.mrb[0].mxu0
        %911 = vdwg.mxu0
        %912 = vmatprep.subr.bf16.mxu0 %v851
        %913 = vmatpush1.bf16.msra.mxu0 %v850
        %914 = vmatprep.subr.bf16.mxu0 %v855
        %915 = vmatpush1.bf16.msra.mxu0 %v854
        %916 = vmatprep.subr.bf16.mxu0 %v859
        %917 = vmatpush1.bf16.msra.mxu0 %v858
        %918 = vmatprep.subr.bf16.mxu0 %v863
        %919 = vmatpush1.bf16.msra.mxu0 %v862
        %920 = vmatprep.subr.bf16.mxu0 %v867
        %921 = vmatpush1.bf16.msra.mxu0 %v866
        %922 = vmatprep.subr.bf16.mxu0 0
        %923 = vmatpush1.bf16.msra.mxu0 0
        %924 = vmatprep.subr.bf16.mxu0 0
        %925 = vmatpush1.bf16.msra.mxu0 0
        %926 = vmatprep.subr.bf16.mxu0 0
        %927 = vmatpush1.bf16.msra.mxu0 0
        %928 = vmatprep.subr.bf16.mxu0 0
        %929 = vmatpush1.bf16.msra.mxu0 0
        %930 = vmatprep.subr.bf16.mxu0 0
        %931 = vmatpush1.bf16.msra.mxu0 0
        %932 = vmatprep.subr.bf16.mxu0 0
        %933 = vmatpush1.bf16.msra.mxu0 0
        %934 = vmatprep.subr.bf16.mxu0 0
        %935 = vmatpush1.bf16.msra.mxu0 0
        %936 = vmatprep.subr.bf16.mxu0 0
        %937 = vmatpush1.bf16.msra.mxu0 0
        %938 = vmatprep.subr.bf16.mxu0 0
        %939 = vmatpush1.bf16.msra.mxu0 0
        %940 = vmatprep.subr.bf16.mxu0 0
        %941 = vmatpush1.bf16.msra.mxu0 0
        %942 = vmatprep.subr.bf16.mxu0 0
        %943 = vmatpush1.bf16.msra.mxu0 0
        %944 = vmatprep.mubr.bf16.mxu0 0
        %945 = vmatmul.mubr.bf16.gmra.mrb[0].mxu0 %v869
        %v946 = vpop.f32.mrb[0].mxu0
        %v947 = vadd.f32 0.0, %v946
        %v948 = vpop.f32.mrb[0].mxu0
        %v949 = vadd.f32 0.0, %v948
        %v950 = vpop.f32.mrb[0].mxu0
        %v951 = vpop.f32.mrb[0].mxu0
        %952 = vdwg.mxu0
        %vm953 = vcmp.ge.f32.partialorder %v906, 0.0
        %vm954 = vcmp.ge.f32.partialorder %v908, 0.0
        %vm955 = vcmp.ge.f32.partialorder %v947, 0.0
        %vm956 = vcmp.ge.f32.partialorder %v949, 0.0
        %v957 = vmul.f32 %v906, 0.2
        %v958 = vmul.f32 %v908, 0.2
        %v959 = vmul.f32 %v947, 0.2
        %v960 = vmul.f32 %v949, 0.2
        %v961 = vsel %vm953, %v906, %v957
        %v962 = vsel %vm954, %v908, %v958
        %v963 = vsel %vm955, %v947, %v959
        %v964 = vsel %vm956, %v949, %v960
        %v965 = vld [vmem:[#allocation9] sm:$0xf]
        %v966 = vld [vmem:[#allocation9 + $0x4] sm:$0xf]
        %v967 = vld [vmem:[#allocation9 + $0x8] sm:$0xf]
        %v968 = vld [vmem:[#allocation9 + $0xc] sm:$0xf]
        %v969 = vld [vmem:[#allocation9 + $0x10] sm:$0xf]
        %v970 = vld [vmem:[#allocation9 + $0x14] sm:$0xf]
        %v971 = vld [vmem:[#allocation9 + $0x18] sm:$0xf]
        %v972 = vld [vmem:[#allocation9 + $0x1c] sm:$0xf]
        %v973 = vld [vmem:[#allocation9 + $0x20] sm:$0xf]
        %v974 = vld [vmem:[#allocation9 + $0x24] sm:$0xf]
        %v975 = vld [vmem:[#allocation9 + $0x28] sm:$0xf]
        %v976 = vld [vmem:[#allocation9 + $0x2c] sm:$0xf]
        %v977 = vld [vmem:[#allocation9 + $0x30] sm:$0xf]
        %v978 = vld [vmem:[#allocation9 + $0x34] sm:$0xf]
        %v979 = vld [vmem:[#allocation9 + $0x38] sm:$0xf]
        %v980 = vld [vmem:[#allocation9 + $0x3c] sm:$0xf]
        %v981 = vld [vmem:[#allocation9 + $0x40] sm:$0xf]
        %v982 = vld [vmem:[#allocation9 + $0x44] sm:$0xf]
        %v983 = vld [vmem:[#allocation9 + $0x48] sm:$0xf]
        %v984 = vld [vmem:[#allocation9 + $0x4c] sm:$0xf]
        %v985 = vld [vmem:[#allocation9 + $0x50] sm:$0xf]
        %v986 = vld [vmem:[#allocation9 + $0x54] sm:$0xf]
        %v987 = vld [vmem:[#allocation9 + $0x58] sm:$0xf]
        %v988 = vld [vmem:[#allocation9 + $0x5c] sm:$0xf]
        %v989 = vld [vmem:[#allocation9 + $0x60] sm:$0xf]
        %v990 = vld [vmem:[#allocation9 + $0x64] sm:$0xf]
        %v991 = vld [vmem:[#allocation9 + $0x68] sm:$0xf]
        %v992 = vld [vmem:[#allocation9 + $0x6c] sm:$0xf]
        %v993 = vld [vmem:[#allocation9 + $0x70] sm:$0xf]
        %v994 = vld [vmem:[#allocation9 + $0x74] sm:$0xf]
        %v995 = vld [vmem:[#allocation9 + $0x78] sm:$0xf]
        %v996 = vld [vmem:[#allocation9 + $0x7c] sm:$0xf]
        %v997 = vld [vmem:[#allocation9 + $0x80] sm:$0xf]
        %v998 = vld [vmem:[#allocation9 + $0x84] sm:$0xf]
        %v999 = vld [vmem:[#allocation9 + $0x88] sm:$0xf]
        %v1000 = vld [vmem:[#allocation9 + $0x8c] sm:$0xf]
        %v1001 = vld [vmem:[#allocation9 + $0x90] sm:$0xf]
        %v1002 = vld [vmem:[#allocation9 + $0x94] sm:$0xf]
        %v1003 = vld [vmem:[#allocation9 + $0x98] sm:$0xf]
        %v1004 = vld [vmem:[#allocation9 + $0x9c] sm:$0xf]
        %v1005 = vld [vmem:[#allocation9 + $0xa0] sm:$0xf]
        %v1006 = vld [vmem:[#allocation9 + $0xa4] sm:$0xf]
        %v1007 = vld [vmem:[#allocation9 + $0xa8] sm:$0xf]
        %v1008 = vld [vmem:[#allocation9 + $0xac] sm:$0xf]
        %v1009 = vld [vmem:[#allocation9 + $0xb0] sm:$0xf]
        %v1010 = vld [vmem:[#allocation9 + $0xb4] sm:$0xf]
        %v1011 = vld [vmem:[#allocation9 + $0xb8] sm:$0xf]
        %v1012 = vld [vmem:[#allocation9 + $0xbc] sm:$0xf]
        %v1013 = vld [vmem:[#allocation9 + $0xc0] sm:$0xf]
        %v1014 = vld [vmem:[#allocation9 + $0xc4] sm:$0xf]
        %v1015 = vld [vmem:[#allocation9 + $0xc8] sm:$0xf]
        %v1016 = vld [vmem:[#allocation9 + $0xcc] sm:$0xf]
        %v1017 = vld [vmem:[#allocation9 + $0xd0] sm:$0xf]
        %v1018 = vld [vmem:[#allocation9 + $0xd4] sm:$0xf]
        %v1019 = vld [vmem:[#allocation9 + $0xd8] sm:$0xf]
        %v1020 = vld [vmem:[#allocation9 + $0xdc] sm:$0xf]
        %v1021 = vld [vmem:[#allocation9 + $0xe0] sm:$0xf]
        %v1022 = vld [vmem:[#allocation9 + $0xe4] sm:$0xf]
        %v1023 = vld [vmem:[#allocation9 + $0xe8] sm:$0xf]
        %v1024 = vld [vmem:[#allocation9 + $0xec] sm:$0xf]
        %v1025 = vld [vmem:[#allocation9 + $0xf0] sm:$0xf]
        %v1026 = vld [vmem:[#allocation9 + $0xf4] sm:$0xf]
        %v1027 = vld [vmem:[#allocation9 + $0xf8] sm:$0xf]
        %v1028 = vld [vmem:[#allocation9 + $0xfc] sm:$0xf]
        %v1029 = vpack.c.bf16 %v961, %v961
        %v1030 = vpack.c.bf16 %v962, %v962
        %v1031 = vpack.c.bf16 %v963, %v963
        %v1032 = vpack.c.bf16 %v964, %v964
        %v1033 = vpack.c.bf16 %v298, %v298
        %v1034 = vpack.c.bf16 %v299, %v299
        %v1035 = vpack.c.bf16 %v300, %v300
        %v1036 = vpack.c.bf16 %v301, %v301
        %v1101 = vunpack.c.l.b16 %v965
        %v1102 = vunpack.c.l.b16 %v966
        %v1103 = vunpack.c.l.b16 %v967
        %v1104 = vunpack.c.l.b16 %v968
        %v1105 = vunpack.c.l.b16 %v969
        %v1106 = vunpack.c.l.b16 %v970
        %v1107 = vunpack.c.l.b16 %v971
        %v1108 = vunpack.c.l.b16 %v972
        %v1109 = vunpack.c.l.b16 %v973
        %v1110 = vunpack.c.l.b16 %v974
        %v1111 = vunpack.c.l.b16 %v975
        %v1112 = vunpack.c.l.b16 %v976
        %v1113 = vunpack.c.l.b16 %v977
        %v1114 = vunpack.c.l.b16 %v978
        %v1115 = vunpack.c.l.b16 %v979
        %v1116 = vunpack.c.l.b16 %v980
        %v1117 = vunpack.c.l.b16 %v981
        %v1118 = vunpack.c.l.b16 %v982
        %v1119 = vunpack.c.l.b16 %v983
        %v1120 = vunpack.c.l.b16 %v984
        %v1121 = vunpack.c.l.b16 %v985
        %v1122 = vunpack.c.l.b16 %v986
        %v1123 = vunpack.c.l.b16 %v987
        %v1124 = vunpack.c.l.b16 %v988
        %v1125 = vunpack.c.l.b16 %v989
        %v1126 = vunpack.c.l.b16 %v990
        %v1127 = vunpack.c.l.b16 %v991
        %v1128 = vunpack.c.l.b16 %v992
        %v1129 = vunpack.c.l.b16 %v993
        %v1130 = vunpack.c.l.b16 %v994
        %v1131 = vunpack.c.l.b16 %v995
        %v1132 = vunpack.c.l.b16 %v996
        %v1133 = vunpack.c.l.b16 %v997
        %v1134 = vunpack.c.l.b16 %v998
        %v1135 = vunpack.c.l.b16 %v999
        %v1136 = vunpack.c.l.b16 %v1000
        %v1137 = vunpack.c.l.b16 %v1001
        %v1138 = vunpack.c.l.b16 %v1002
        %v1139 = vunpack.c.l.b16 %v1003
        %v1140 = vunpack.c.l.b16 %v1004
        %v1141 = vunpack.c.l.b16 %v1005
        %v1142 = vunpack.c.l.b16 %v1006
        %v1143 = vunpack.c.l.b16 %v1007
        %v1144 = vunpack.c.l.b16 %v1008
        %v1145 = vunpack.c.l.b16 %v1009
        %v1146 = vunpack.c.l.b16 %v1010
        %v1147 = vunpack.c.l.b16 %v1011
        %v1148 = vunpack.c.l.b16 %v1012
        %v1149 = vunpack.c.l.b16 %v1013
        %v1150 = vunpack.c.l.b16 %v1014
        %v1151 = vunpack.c.l.b16 %v1015
        %v1152 = vunpack.c.l.b16 %v1016
        %v1153 = vunpack.c.l.b16 %v1017
        %v1154 = vunpack.c.l.b16 %v1018
        %v1155 = vunpack.c.l.b16 %v1019
        %v1156 = vunpack.c.l.b16 %v1020
        %v1157 = vunpack.c.l.b16 %v1021
        %v1158 = vunpack.c.l.b16 %v1022
        %v1159 = vunpack.c.l.b16 %v1023
        %v1160 = vunpack.c.l.b16 %v1024
        %v1161 = vunpack.c.l.b16 %v1025
        %v1162 = vunpack.c.l.b16 %v1026
        %v1163 = vunpack.c.l.b16 %v1027
        %v1164 = vunpack.c.l.b16 %v1028
        %v1165 = vpack.c.b16 %v1102, %v1101
        %v1166 = vpack.c.b16 %v1104, %v1103
        %v1167 = vpack.c.b16 %v1106, %v1105
        %v1168 = vpack.c.b16 %v1108, %v1107
        %v1169 = vpack.c.b16 %v1110, %v1109
        %v1170 = vpack.c.b16 %v1112, %v1111
        %v1171 = vpack.c.b16 %v1114, %v1113
        %v1172 = vpack.c.b16 %v1116, %v1115
        %v1173 = vpack.c.b16 %v1118, %v1117
        %v1174 = vpack.c.b16 %v1120, %v1119
        %v1175 = vpack.c.b16 %v1122, %v1121
        %v1176 = vpack.c.b16 %v1124, %v1123
        %v1177 = vpack.c.b16 %v1126, %v1125
        %v1178 = vpack.c.b16 %v1128, %v1127
        %v1179 = vpack.c.b16 %v1130, %v1129
        %v1180 = vpack.c.b16 %v1132, %v1131
        %v1181 = vpack.c.b16 %v1134, %v1133
        %v1182 = vpack.c.b16 %v1136, %v1135
        %v1183 = vpack.c.b16 %v1138, %v1137
        %v1184 = vpack.c.b16 %v1140, %v1139
        %v1185 = vpack.c.b16 %v1142, %v1141
        %v1186 = vpack.c.b16 %v1144, %v1143
        %v1187 = vpack.c.b16 %v1146, %v1145
        %v1188 = vpack.c.b16 %v1148, %v1147
        %v1189 = vpack.c.b16 %v1150, %v1149
        %v1190 = vpack.c.b16 %v1152, %v1151
        %v1191 = vpack.c.b16 %v1154, %v1153
        %v1192 = vpack.c.b16 %v1156, %v1155
        %v1193 = vpack.c.b16 %v1158, %v1157
        %v1194 = vpack.c.b16 %v1160, %v1159
        %v1195 = vpack.c.b16 %v1162, %v1161
        %v1196 = vpack.c.b16 %v1164, %v1163
        %1229 = vmatprep.subr.bf16.mxu0 0
        %1230 = vmatpush1.bf16.msra.mxu0 %v1165
        %1231 = vmatprep.subr.bf16.mxu0 0
        %1232 = vmatpush1.bf16.msra.mxu0 %v1166
        %1233 = vmatprep.subr.bf16.mxu0 0
        %1234 = vmatpush1.bf16.msra.mxu0 %v1167
        %1235 = vmatprep.subr.bf16.mxu0 0
        %1236 = vmatpush1.bf16.msra.mxu0 %v1168
        %1237 = vmatprep.subr.bf16.mxu0 0
        %1238 = vmatpush1.bf16.msra.mxu0 %v1169
        %1239 = vmatprep.subr.bf16.mxu0 0
        %1240 = vmatpush1.bf16.msra.mxu0 %v1170
        %1241 = vmatprep.subr.bf16.mxu0 0
        %1242 = vmatpush1.bf16.msra.mxu0 %v1171
        %1243 = vmatprep.subr.bf16.mxu0 0
        %1244 = vmatpush1.bf16.msra.mxu0 %v1172
        %1245 = vmatprep.subr.bf16.mxu0 0
        %1246 = vmatpush1.bf16.msra.mxu0 %v1173
        %1247 = vmatprep.subr.bf16.mxu0 0
        %1248 = vmatpush1.bf16.msra.mxu0 %v1174
        %1249 = vmatprep.subr.bf16.mxu0 0
        %1250 = vmatpush1.bf16.msra.mxu0 %v1175
        %1251 = vmatprep.subr.bf16.mxu0 0
        %1252 = vmatpush1.bf16.msra.mxu0 %v1176
        %1253 = vmatprep.subr.bf16.mxu0 0
        %1254 = vmatpush1.bf16.msra.mxu0 %v1177
        %1255 = vmatprep.subr.bf16.mxu0 0
        %1256 = vmatpush1.bf16.msra.mxu0 %v1178
        %1257 = vmatprep.subr.bf16.mxu0 0
        %1258 = vmatpush1.bf16.msra.mxu0 %v1179
        %1259 = vmatprep.subr.bf16.mxu0 0
        %1260 = vmatpush1.bf16.msra.mxu0 %v1180
        %1261 = vmatprep.mubr.bf16.mxu0 %v1034
        %1262 = vmatmul.mubr.bf16.gmra.mrb[0].mxu0 %v1033
        %v1263 = vpop.f32.mrb[0].mxu0
        %v1264 = vadd.f32 0.0, %v1263
        %v1265 = vpop.f32.mrb[0].mxu0
        %v1266 = vpop.f32.mrb[0].mxu0
        %v1267 = vpop.f32.mrb[0].mxu0
        %1268 = vdwg.mxu0
        %1269 = vmatprep.subr.bf16.mxu0 0
        %1270 = vmatpush1.bf16.msra.mxu0 %v1181
        %1271 = vmatprep.subr.bf16.mxu0 0
        %1272 = vmatpush1.bf16.msra.mxu0 %v1182
        %1273 = vmatprep.subr.bf16.mxu0 0
        %1274 = vmatpush1.bf16.msra.mxu0 %v1183
        %1275 = vmatprep.subr.bf16.mxu0 0
        %1276 = vmatpush1.bf16.msra.mxu0 %v1184
        %1277 = vmatprep.subr.bf16.mxu0 0
        %1278 = vmatpush1.bf16.msra.mxu0 %v1185
        %1279 = vmatprep.subr.bf16.mxu0 0
        %1280 = vmatpush1.bf16.msra.mxu0 %v1186
        %1281 = vmatprep.subr.bf16.mxu0 0
        %1282 = vmatpush1.bf16.msra.mxu0 %v1187
        %1283 = vmatprep.subr.bf16.mxu0 0
        %1284 = vmatpush1.bf16.msra.mxu0 %v1188
        %1285 = vmatprep.subr.bf16.mxu0 0
        %1286 = vmatpush1.bf16.msra.mxu0 %v1189
        %1287 = vmatprep.subr.bf16.mxu0 0
        %1288 = vmatpush1.bf16.msra.mxu0 %v1190
        %1289 = vmatprep.subr.bf16.mxu0 0
        %1290 = vmatpush1.bf16.msra.mxu0 %v1191
        %1291 = vmatprep.subr.bf16.mxu0 0
        %1292 = vmatpush1.bf16.msra.mxu0 %v1192
        %1293 = vmatprep.subr.bf16.mxu0 0
        %1294 = vmatpush1.bf16.msra.mxu0 %v1193
        %1295 = vmatprep.subr.bf16.mxu0 0
        %1296 = vmatpush1.bf16.msra.mxu0 %v1194
        %1297 = vmatprep.subr.bf16.mxu0 0
        %1298 = vmatpush1.bf16.msra.mxu0 %v1195
        %1299 = vmatprep.subr.bf16.mxu0 0
        %1300 = vmatpush1.bf16.msra.mxu0 %v1196
        %1301 = vmatprep.mubr.bf16.mxu0 %v1036
        %1302 = vmatmul.mubr.bf16.gmra.mrb[0].mxu0 %v1035
        %v1303 = vpop.f32.mrb[0].mxu0
        %v1304 = vadd.f32 %v1264, %v1303
        %v1305 = vpop.f32.mrb[0].mxu0
        %v1306 = vpop.f32.mrb[0].mxu0
        %v1307 = vpop.f32.mrb[0].mxu0
        %1308 = vdwg.mxu0
        %v1309 = vld [vmem:[%s479] sm:$0xff]
        %v1310 = vpack.c.bf16 %v1309, %v1304
        %v1311 = vld [vmem:[%s5] sm:$0xf]
        %vm1312 = vcmask 130048
        %v1314 = vsel %vm1312, %v1311, 0
        %1316 = vmatprep.subr.bf16.mxu0 0
        %1317 = vmatpush1.bf16.msra.mxu0 %v1310
        %1318 = vmatprep.subr.bf16.mxu0 0
        %1319 = vmatpush1.bf16.msra.mxu0 0
        %1320 = vmatprep.subr.bf16.mxu0 0
        %1321 = vmatpush1.bf16.msra.mxu0 0
        %1322 = vmatprep.subr.bf16.mxu0 0
        %1323 = vmatpush1.bf16.msra.mxu0 0
        %1324 = vmatprep.subr.bf16.mxu0 0
        %1325 = vmatpush1.bf16.msra.mxu0 0
        %1326 = vmatprep.subr.bf16.mxu0 0
        %1327 = vmatpush1.bf16.msra.mxu0 0
        %1328 = vmatprep.subr.bf16.mxu0 0
        %1329 = vmatpush1.bf16.msra.mxu0 0
        %1330 = vmatprep.subr.bf16.mxu0 0
        %1331 = vmatpush1.bf16.msra.mxu0 0
        %1332 = vmatprep.subr.bf16.mxu0 0
        %1333 = vmatpush1.bf16.msra.mxu0 0
        %1334 = vmatprep.subr.bf16.mxu0 0
        %1335 = vmatpush1.bf16.msra.mxu0 0
        %1336 = vmatprep.subr.bf16.mxu0 0
        %1337 = vmatpush1.bf16.msra.mxu0 0
        %1338 = vmatprep.subr.bf16.mxu0 0
        %1339 = vmatpush1.bf16.msra.mxu0 0
        %1340 = vmatprep.subr.bf16.mxu0 0
        %1341 = vmatpush1.bf16.msra.mxu0 0
        %1342 = vmatprep.subr.bf16.mxu0 0
        %1343 = vmatpush1.bf16.msra.mxu0 0
        %1344 = vmatprep.subr.bf16.mxu0 0
        %1345 = vmatpush1.bf16.msra.mxu0 0
        %1346 = vmatprep.subr.bf16.mxu0 0
        %1347 = vmatpush1.bf16.msra.mxu0 0
        %1348 = vmatprep.mubr.bf16.mxu0 0
        %1349 = vmatmul.mubr.bf16.gmra.mrb[0].mxu0 %v1314
        %v1350 = vpop.f32.mrb[0].mxu0
        %v1351 = vadd.f32 0.0, %v1350
        %v1352 = vpop.f32.mrb[0].mxu0
        %v1353 = vpop.f32.mrb[0].mxu0
        %v1354 = vpop.f32.mrb[0].mxu0
        %1355 = vdwg.mxu0
        %vm1356 = vcmp.ge.f32.partialorder %v1351, 0.0
        %v1357 = vmul.f32 %v1351, 0.2
        %v1358 = vsel %vm1356, %v1351, %v1357
        %1359 = vmatprep.subr.bf16.mxu0 0
        %1360 = vmatpush1.bf16.msra.mxu0 %v1165
        %1361 = vmatprep.subr.bf16.mxu0 0
        %1362 = vmatpush1.bf16.msra.mxu0 %v1166
        %1363 = vmatprep.subr.bf16.mxu0 0
        %1364 = vmatpush1.bf16.msra.mxu0 %v1167
        %1365 = vmatprep.subr.bf16.mxu0 0
        %1366 = vmatpush1.bf16.msra.mxu0 %v1168
        %1367 = vmatprep.subr.bf16.mxu0 0
        %1368 = vmatpush1.bf16.msra.mxu0 %v1169
        %1369 = vmatprep.subr.bf16.mxu0 0
        %1370 = vmatpush1.bf16.msra.mxu0 %v1170
        %1371 = vmatprep.subr.bf16.mxu0 0
        %1372 = vmatpush1.bf16.msra.mxu0 %v1171
        %1373 = vmatprep.subr.bf16.mxu0 0
        %1374 = vmatpush1.bf16.msra.mxu0 %v1172
        %1375 = vmatprep.subr.bf16.mxu0 0
        %1376 = vmatpush1.bf16.msra.mxu0 %v1173
        %1377 = vmatprep.subr.bf16.mxu0 0
        %1378 = vmatpush1.bf16.msra.mxu0 %v1174
        %1379 = vmatprep.subr.bf16.mxu0 0
        %1380 = vmatpush1.bf16.msra.mxu0 %v1175
        %1381 = vmatprep.subr.bf16.mxu0 0
        %1382 = vmatpush1.bf16.msra.mxu0 %v1176
        %1383 = vmatprep.subr.bf16.mxu0 0
        %1384 = vmatpush1.bf16.msra.mxu0 %v1177
        %1385 = vmatprep.subr.bf16.mxu0 0
        %1386 = vmatpush1.bf16.msra.mxu0 %v1178
        %1387 = vmatprep.subr.bf16.mxu0 0
        %1388 = vmatpush1.bf16.msra.mxu0 %v1179
        %1389 = vmatprep.subr.bf16.mxu0 0
        %1390 = vmatpush1.bf16.msra.mxu0 %v1180
        %1391 = vmatprep.mubr.bf16.mxu0 %v1030
        %1392 = vmatmul.mubr.bf16.gmra.mrb[0].mxu0 %v1029
        %v1393 = vpop.f32.mrb[0].mxu0
        %v1394 = vadd.f32 %v1358, %v1393
        %v1395 = vpop.f32.mrb[0].mxu0
        %v1396 = vpop.f32.mrb[0].mxu0
        %v1397 = vpop.f32.mrb[0].mxu0
        %1398 = vdwg.mxu0
        %1399 = vmatprep.subr.bf16.mxu0 0
        %1400 = vmatpush1.bf16.msra.mxu0 %v1181
        %1401 = vmatprep.subr.bf16.mxu0 0
        %1402 = vmatpush1.bf16.msra.mxu0 %v1182
        %1403 = vmatprep.subr.bf16.mxu0 0
        %1404 = vmatpush1.bf16.msra.mxu0 %v1183
        %1405 = vmatprep.subr.bf16.mxu0 0
        %1406 = vmatpush1.bf16.msra.mxu0 %v1184
        %1407 = vmatprep.subr.bf16.mxu0 0
        %1408 = vmatpush1.bf16.msra.mxu0 %v1185
        %1409 = vmatprep.subr.bf16.mxu0 0
        %1410 = vmatpush1.bf16.msra.mxu0 %v1186
        %1411 = vmatprep.subr.bf16.mxu0 0
        %1412 = vmatpush1.bf16.msra.mxu0 %v1187
        %1413 = vmatprep.subr.bf16.mxu0 0
        %1414 = vmatpush1.bf16.msra.mxu0 %v1188
        %1415 = vmatprep.subr.bf16.mxu0 0
        %1416 = vmatpush1.bf16.msra.mxu0 %v1189
        %1417 = vmatprep.subr.bf16.mxu0 0
        %1418 = vmatpush1.bf16.msra.mxu0 %v1190
        %1419 = vmatprep.subr.bf16.mxu0 0
        %1420 = vmatpush1.bf16.msra.mxu0 %v1191
        %1421 = vmatprep.subr.bf16.mxu0 0
        %1422 = vmatpush1.bf16.msra.mxu0 %v1192
        %1423 = vmatprep.subr.bf16.mxu0 0
        %1424 = vmatpush1.bf16.msra.mxu0 %v1193
        %1425 = vmatprep.subr.bf16.mxu0 0
        %1426 = vmatpush1.bf16.msra.mxu0 %v1194
        %1427 = vmatprep.subr.bf16.mxu0 0
        %1428 = vmatpush1.bf16.msra.mxu0 %v1195
        %1429 = vmatprep.subr.bf16.mxu0 0
        %1430 = vmatpush1.bf16.msra.mxu0 %v1196
        %1431 = vmatprep.mubr.bf16.mxu0 %v1032
        %1432 = vmatmul.mubr.bf16.gmra.mrb[0].mxu0 %v1031
        %v1433 = vpop.f32.mrb[0].mxu0
        %v1434 = vadd.f32 %v1394, %v1433
        %v1435 = vpop.f32.mrb[0].mxu0
        %v1436 = vpop.f32.mrb[0].mxu0
        %v1437 = vpop.f32.mrb[0].mxu0
        %1438 = vdwg.mxu0
        %v1439 = vmul.f32 %v1434, 0.70710677
        %1440 = vst [vmem:[%s296] sm:$0xff] %v1439
        %s1441 = sand.u32 %s163, 1
        %s1442 = scalar_lea.sflag [#allocation6], %s1441
        %s1443 = sand.u32 %s163, 1
        %s1444 = smul.addr %s1443, 8
        %s1445 = scalar_lea.vmem [#allocation10], %s1444
        // Predicated region
        $region57: #{tpu_custom_call.1} parent=43 // pred_check
          %p1446 = pneg %p173
        $region58: #{tpu_custom_call.1} parent=43 // pred_check_branch
          %1448 = sbr.rel (%p1446) target = $region60
        $region59: #{tpu_custom_call.1} parent=43 // pred_region
          %s1450 = ssub.s32 128, 128
          %1451 = vsyncadd %s1442, %s1450
          %s1452 = smul.addr %s24, 128
          %s1453 = scalar_lea.hbm %s6, %s1452
          %s1455 = sshll.u32 %s1445, 4
          %s1456 = int_to_ptr.vmem [resolvable:$true] %s1455
          %1458 = dma.vmem_to_hbm [thread:$0]  %s1456, 128, %s1453, %s1442
        $region60: #{tpu_custom_call.1} parent=43 // pred_fallthru
          _
      $region44: #{tpu_custom_call.1} parent=5 // pred_fallthru
        _
      %p1459 = scmp.le.s32.totalorder 2, %s19
      // Predicated region
      $region61: #{tpu_custom_call.1} parent=5 // pred_check
        %p1460 = pneg %p1459
      $region62: #{tpu_custom_call.1} parent=5 // pred_check_branch
        %1462 = sbr.rel (%p1460) target = $region64
      $region63: #{tpu_custom_call.1} parent=5 // pred_region
        %s1463 = ssub.s32 %s19, 2
        // Predicated region
        $region65: #{tpu_custom_call.1} parent=63 // pred_check
          %p1464 = pneg %p179
        $region66: #{tpu_custom_call.1} parent=63 // pred_check_branch
          %1466 = sbr.rel (%p1464) target = $region68
        $region67: #{tpu_custom_call.1} parent=63 // pred_region
          %s1467 = sand.u32 %s164, 1
          %s1468 = scalar_lea.sflag [#allocation6], %s1467
          %s1469 = sand.u32 %s164, 1
          %s1470 = smul.addr %s1469, 8
          %s1471 = scalar_lea.vmem [#allocation10], %s1470
          %1472 = dma.done %s1468, 128
        $region68: #{tpu_custom_call.1} parent=63 // pred_fallthru
          _
      $region64: #{tpu_custom_call.1} parent=5 // pred_fallthru
        _
    $region6: #{tpu_custom_call.1} parent=1 // loop_footer
      %s23 = sadd.s32 1, %s19
    $region7: #{tpu_custom_call.1} parent=1 // loop_footer_branch
      %18 = sbr.rel target = $region3
    $region8: #{tpu_custom_call.1} parent=1 // loop_exit
      _
    %1473 = vsyncpa [#allocation5], 1
    %s1474 = scalar_lea.sflag [#allocation5], 1
    %1475 = vsyncpa %s1474, 1
    %1476 = vsyncpa [#allocation8], 1
    %1477 = vsyncpa [#allocation6], 1
    %s1478 = scalar_lea.sflag [#allocation6], 1
    %1479 = vsyncpa %s1478, 1

</llo_original>
